<compile_context>
chip_gen: v7x
topology: tpu7x:2x2x1
jax: 0.10.0
libtpu: 0.0.40
codegen_flags: <defaults>
</compile_context>

<pallas_src>
import jax
import jax.numpy as jnp
import numpy as np
from jax import lax
from jax.experimental import pallas as pl
from jax.experimental.pallas import tpu as pltpu


# --------------------------- VMEM budget per chip --------------------------- #

def _vmem_limit_bytes():
    cap = 0
    try:
        get_info = getattr(pltpu, "get_tpu_info", None)
        if get_info is not None:
            cap = int(getattr(get_info(), "vmem_capacity_bytes", 0))
    except Exception:
        cap = 0
    if cap <= 0:
        cap = 64 * 1024 * 1024           # conservative fallback (v7x physical)
    # ~half of physical: 64 MiB on v5e/v6e (128 MiB), 32 MiB on v7x (64 MiB).
    return int(min(96 * 1024 * 1024, max(32 * 1024 * 1024, cap // 2)))


# ------------------------------ Pallas kernel ------------------------------- #

def _fused_conv_kernel(x_ref, wd_ref, bd_ref, wu_ref, bu_ref,
                       z_ref, s_ref, xpad_ref, ypad_ref):
    """Per-image fused forward: down conv (as 3x3/s1 GEMM over the space-to-depth
    map), ReLU, phase-decomposed deconv GEMM, bias, BN partial statistics.

    All patch gathering uses unit-stride static slices of VMEM scratch; both GEMMs
    run on the MXU with bf16 inputs and f32 accumulation.
    """
    ho, wo, c4 = x_ref.shape[1], x_ref.shape[2], x_ref.shape[3]   # c4 = 4*cin
    cout = wd_ref.shape[1]
    m = ho * wo

    # ---- zero-padded halo of the (already LeakyReLU'd) space-to-depth x map ----
    # Scratch is re-zeroed every step: cheap, and safe under megacore "parallel".
    xpad_ref[...] = jnp.zeros_like(xpad_ref)
    xpad_ref[1:ho + 1, 1:wo + 1, :] = x_ref[0]

    # ---- down conv: 3x3 stride-1 window GEMM over the padded s2d map ----
    taps = [xpad_ref[r:r + ho, s:s + wo, :].reshape(m, c4)
            for r in range(3) for s in range(3)]
    a1 = jnp.concatenate(taps, axis=1)                              # (m, 36*cin) bf16
    y = jnp.dot(a1, wd_ref[...], preferred_element_type=jnp.float32) + bd_ref[...]
    y = jnp.maximum(y, 0.0)                                         # fused up-path ReLU

    # ---- up deconv: phase-decomposed 3x3 window GEMM over padded y ----
    ypad_ref[...] = jnp.zeros_like(ypad_ref)
    ypad_ref[1:ho + 1, 1:wo + 1, :] = y.astype(ypad_ref.dtype).reshape(ho, wo, cout)
    taps = [ypad_ref[r:r + ho, s:s + wo, :].reshape(m, cout)
            for r in range(3) for s in range(3)]
    a2 = jnp.concatenate(taps, axis=1)                              # (m, 9*cout) bf16
    z = jnp.dot(a2, wu_ref[...], preferred_element_type=jnp.float32) + bu_ref[...]

    # ---- outputs: bf16 z (halved HBM traffic) + f32 BN partial stats (one row) ----
    z_ref[0] = z.astype(z_ref.dtype)
    c4z = z.shape[1]
    sums = jnp.sum(z, axis=0, keepdims=True)                        # (1, 4*cin) f32
    sqs = jnp.sum(z * z, axis=0, keepdims=True)                     # (1, 4*cin) f32
    s_ref[0, 0:1, :] = jnp.concatenate([sums, sqs], axis=1)         # (1, 8*cin)


# --------------------------- weight repacking (once) ------------------------- #

def _build_down_weight(conv_w):
    """Conv2d(k4,s2,p1) weight -> 3x3-window weight over the space-to-depth map.

    a1 columns are ordered (r, s, dh, dw, c); tap (r, s, dh, dw) corresponds to the
    original conv tap (kh, kw) = (2r+dh-1, 2s+dw-1) (out-of-range taps stay zero)."""
    conv_w = np.asarray(conv_w, dtype=np.float32)
    cout, cin = conv_w.shape[0], conv_w.shape[1]
    w = np.zeros((3, 3, 2, 2, cin, cout), np.float32)
    for r in range(3):
        for s in range(3):
            for dh in range(2):
                for dw in range(2):
                    kh, kw = 2 * r + dh - 1, 2 * s + dw - 1
                    if 0 <= kh < 4 and 0 <= kw < 4:
                        w[r, s, dh, dw] = conv_w[:, :, kh, kw].T
    return jnp.asarray(w.reshape(9 * 4 * cin, cout))


def _build_up_weight(deconv_w):
    """Combined phase weight for ConvTranspose2d(k=4, s=2, p=1).

    Output pixel (2a+ph, 2b+pw) only receives taps kh = 3+ph-2r, kw = 3+pw-2s with
    (r, s) in the 2x2 sub-window {ph,ph+1}x{pw,pw+1} of the 3x3 patch of pad(y,1)
    anchored at (a, b).  Rows ordered (r, s, j); columns ordered (ph, pw, c)."""
    deconv_w = np.asarray(deconv_w, dtype=np.float32)
    cout, cin = deconv_w.shape[0], deconv_w.shape[1]
    w = np.zeros((3, 3, cout, 2, 2, cin), np.float32)
    for ph in range(2):
        for pw in range(2):
            for r in range(ph, ph + 2):
                for s in range(pw, pw + 2):
                    kh, kw = 3 + ph - 2 * r, 3 + pw - 2 * s
                    w[r, s, :, ph, pw, :] = deconv_w[:, :, kh, kw]
    return jnp.asarray(w.reshape(9 * cout, 4 * cin))


def prepare_unet_params(p):
    """One-time parameter repacking (hoisted out of the per-call path)."""
    cin = p["conv_w"].shape[1]
    return {
        "w_down3": _build_down_weight(p["conv_w"]).astype(jnp.bfloat16),   # (36cin, cout)
        "b_down": p["conv_b"].astype(jnp.float32).reshape(1, -1),
        "w_up": _build_up_weight(p["deconv_w"]).astype(jnp.bfloat16),      # (9cout, 4cin)
        "b_up": jnp.tile(p["deconv_b"].astype(jnp.float32), 4).reshape(1, 4 * cin),
        "gamma": p["gamma"].astype(jnp.float32),
        "beta": p["beta"].astype(jnp.float32),
    }


# ------------------------------- forward pass -------------------------------- #

def unet_block_innermost_pallas(x, prep):
    """x: (N, in_c, H, W) f32 NCHW  ->  (N, 2*in_c, H, W) f32 NCHW."""
    n, cin, h, w = x.shape
    cout = prep["w_down3"].shape[1]
    ho, wo = h // 2, w // 2
    c4 = 4 * cin

    # ---- LeakyReLU once on x + space-to-depth (one fused XLA pass over x) ----
    # Exact w.r.t. the conv's zero padding because LeakyReLU(0) == 0.
    xa = jnp.where(x >= 0, x, 0.2 * x)
    xs2d = xa.reshape(n, cin, ho, 2, wo, 2).transpose(0, 2, 4, 3, 5, 1)
    xs2d = xs2d.reshape(n, ho, wo, c4).astype(jnp.bfloat16)          # last dim = (dh, dw, c)

    flops = 2 * n * ho * wo * (9 * c4 * cout + 9 * cout * c4)
    bytes_accessed = (n * ho * wo * c4 * 2                  # xs2d in (bf16)
                      + (9 * c4 * cout + 9 * cout * c4) * 2  # resident weights
                      + (cout + c4) * 4                      # biases
                      + n * ho * wo * c4 * 2                 # z out (bf16)
                      + n * 8 * cin * 4)                     # stats out

    z, stats = pl.pallas_call(
        _fused_conv_kernel,
        out_shape=(jax.ShapeDtypeStruct((n, ho * wo, c4), jnp.bfloat16),
                   jax.ShapeDtypeStruct((n, 1, 8 * cin), jnp.float32)),
        grid=(n,),
        in_specs=[
            pl.BlockSpec((1, ho, wo, c4), lambda i: (i, 0, 0, 0)),   # streamed per image
            pl.BlockSpec((9 * c4, cout), lambda i: (0, 0)),          # down weight: resident
            pl.BlockSpec((1, cout), lambda i: (0, 0)),               # down bias:   resident
            pl.BlockSpec((9 * cout, c4), lambda i: (0, 0)),          # up weight:   resident
            pl.BlockSpec((1, c4), lambda i: (0, 0)),                 # up bias:     resident
        ],
        out_specs=(pl.BlockSpec((1, ho * wo, c4), lambda i: (i, 0, 0)),
                   pl.BlockSpec((1, 1, 8 * cin), lambda i: (i, 0, 0))),
        scratch_shapes=[
            pltpu.VMEM((ho + 2, wo + 2, c4), jnp.bfloat16),          # padded s2d(x)
            pltpu.VMEM((ho + 2, wo + 2, cout), jnp.bfloat16),        # padded ReLU(y)
        ],
        compiler_params=pltpu.CompilerParams(
            dimension_semantics=("parallel",),                       # images independent
            vmem_limit_bytes=_vmem_limit_bytes()),
        cost_estimate=pl.CostEstimate(flops=flops, transcendentals=0,
                                      bytes_accessed=bytes_accessed),
    )(xs2d, prep["w_down3"], prep["b_down"], prep["w_up"], prep["b_up"])

    # ---- BatchNorm2d(cin) training-mode batch statistics (tiny f32 reduction) ----
    st = stats.reshape(n, 2, c4).sum(axis=0)              # (2, 4cin): sums, sumsq
    tot = st.reshape(2, 4, cin).sum(axis=1)               # fold the 4 phases -> (2, cin)
    count = float(n * h * w)
    mean = tot[0] / count
    var = tot[1] / count - mean * mean                    # one-pass E[z^2] - mean^2 (f32)
    scale = prep["gamma"] * lax.rsqrt(var + 1e-5)
    shift = prep["beta"] - mean * scale
    scale4 = jnp.tile(scale, 4)                           # (ph, pw, c) column order
    shift4 = jnp.tile(shift, 4)

    # ---- affine + 2x2 phase de-interleave + NCHW + skip-concat: one XLA fusion ----
    zf = z.astype(jnp.float32) * scale4 + shift4
    zf = zf.reshape(n, ho, wo, 2, 2, cin).transpose(0, 5, 1, 3, 2, 4).reshape(n, cin, h, w)
    return jnp.concatenate([x, zf], axis=1)


# ------------------------- pure-JAX reference check -------------------------- #

def ref_forward(x, p):
    lrelu = jnp.where(x >= 0, x, 0.2 * x)
    y = lax.conv_general_dilated(lrelu, p["conv_w"], (2, 2), [(1, 1), (1, 1)],
                                 dimension_numbers=("NCHW", "OIHW", "NCHW"))
    y = y + p["conv_b"][None, :, None, None]
    y = jnp.maximum(y, 0.0)
    rhs = jnp.flip(p["deconv_w"], axis=(2, 3)).transpose(1, 0, 2, 3)
    z = lax.conv_general_dilated(y, rhs, (1, 1), [(2, 2), (2, 2)],
                                 lhs_dilation=(2, 2),
                                 dimension_numbers=("NCHW", "OIHW", "NCHW"))
    z = z + p["deconv_b"][None, :, None, None]
    mean = jnp.mean(z, axis=(0, 2, 3), keepdims=True)
    var = jnp.mean((z - mean) ** 2, axis=(0, 2, 3), keepdims=True)
    zn = (z - mean) / jnp.sqrt(var + 1e-5)
    zn = zn * p["gamma"][None, :, None, None] + p["beta"][None, :, None, None]
    return jnp.concatenate([x, zn], axis=1)


# ---------------------------------- main ------------------------------------- #

if __name__ == "__main__":
    key = jax.random.PRNGKey(0)
    k = jax.random.split(key, 5)

    N, in_c, out_c, H, W = 2, 4, 8, 16, 16
    x = jax.random.normal(k[0], (N, in_c, H, W), jnp.float32)

    # Deterministic synthetic parameters (shapes per nn.Module __init__, innermost).
    params = {
        "conv_w":   0.1 * jax.random.normal(k[1], (out_c, in_c, 4, 4), jnp.float32),
        "conv_b":   0.1 * jax.random.normal(k[2], (out_c,), jnp.float32),
        "deconv_w": 0.1 * jax.random.normal(k[3], (out_c, in_c, 4, 4), jnp.float32),
        "deconv_b": 0.1 * jax.random.normal(k[4], (in_c,), jnp.float32),
        "gamma":    jnp.ones((in_c,), jnp.float32),   # BatchNorm2d default init
        "beta":     jnp.zeros((in_c,), jnp.float32),
    }

    prep = prepare_unet_params(params)                # one-time weight repacking
    fwd = jax.jit(unet_block_innermost_pallas)
    out = jax.block_until_ready(fwd(x, prep))

    ref = ref_forward(x, params)
    # bf16 MXU inputs, bf16 z storage (f32 accumulation and f32 BN statistics) vs. the
    # all-f32 reference: worst post-normalization deviation is ~1e-2, so 5e-2 bounds it
    # comfortably while still catching layout / phase-decomposition bugs (those would be
    # O(1) after normalization).
    np.testing.assert_allclose(np.asarray(out), np.asarray(ref), rtol=5e-2, atol=5e-2)
    assert out.shape == (N, 2 * in_c, H, W)

    print("KERNEL_OK")
</pallas_src>

<mosaic_0001>
module attributes {stable_mosaic.version = 11 : i64} {
  func.func @_fused_conv_kernel(%arg0: i32, %arg1: memref<1x8x8x16xbf16, #tpu.memory_space<vmem>>, %arg2: memref<144x8xbf16, #tpu.memory_space<vmem>>, %arg3: memref<1x8xf32, #tpu.memory_space<vmem>>, %arg4: memref<72x16xbf16, #tpu.memory_space<vmem>>, %arg5: memref<1x16xf32, #tpu.memory_space<vmem>>, %arg6: memref<1x64x16xbf16, #tpu.memory_space<vmem>>, %arg7: memref<1x1x32xf32, #tpu.memory_space<vmem>>, %arg8: memref<10x10x16xbf16, #tpu.memory_space<vmem>>, %arg9: memref<10x10x8xbf16, #tpu.memory_space<vmem>>) attributes {dimension_semantics = [#tpu.dimension_semantics<parallel>], iteration_bounds = array<i64: 2>, scalar_prefetch = 0 : i64, scratch_operands = 2 : i64, tpu.core_type = #tpu.core_type<tc>, window_params = [{transform_indices = @transform_0, window_bounds = array<i64: 1, 8, 8, 16>}, {pipeline_mode = #tpu.pipeline_mode<synchronous>, transform_indices = @transform_1, window_bounds = array<i64: 144, 8>}, {pipeline_mode = #tpu.pipeline_mode<synchronous>, transform_indices = @transform_2, window_bounds = array<i64: 1, 8>}, {pipeline_mode = #tpu.pipeline_mode<synchronous>, transform_indices = @transform_3, window_bounds = array<i64: 72, 16>}, {pipeline_mode = #tpu.pipeline_mode<synchronous>, transform_indices = @transform_4, window_bounds = array<i64: 1, 16>}, {transform_indices = @transform_5, window_bounds = array<i64: 1, 64, 16>}, {transform_indices = @transform_6, window_bounds = array<i64: 1, 1, 32>}]} {
    %cst = arith.constant 0.000000e+00 : bf16
    %0 = vector.broadcast %cst : bf16 to vector<10x10x16xbf16>
    %c0 = arith.constant 0 : index
    %c0_0 = arith.constant 0 : index
    %c0_1 = arith.constant 0 : index
    %1 = vector.load %arg8[%c0, %c0_0, %c0_1] : memref<10x10x16xbf16, #tpu.memory_space<vmem>>, vector<10x10x16xbf16>
    tpu.vector_store %arg8[%c0, %c0_0, %c0_1], %0 {strides = array<i32>} : memref<10x10x16xbf16, #tpu.memory_space<vmem>>, vector<10x10x16xbf16>,
    %c0_2 = arith.constant 0 : index
    %c0_3 = arith.constant 0 : index
    %c0_4 = arith.constant 0 : index
    %c0_5 = arith.constant 0 : index
    %2 = vector.load %arg1[%c0_2, %c0_3, %c0_4, %c0_5] : memref<1x8x8x16xbf16, #tpu.memory_space<vmem>>, vector<1x8x8x16xbf16>
    %3 = vector.shape_cast %2 : vector<1x8x8x16xbf16> to vector<8x8x16xbf16>
    %c1 = arith.constant 1 : index
    %c1_6 = arith.constant 1 : index
    %c0_7 = arith.constant 0 : index
    %4 = vector.load %arg8[%c1, %c1_6, %c0_7] : memref<10x10x16xbf16, #tpu.memory_space<vmem>>, vector<8x8x16xbf16>
    tpu.vector_store %arg8[%c1, %c1_6, %c0_7], %3 {strides = array<i32>} : memref<10x10x16xbf16, #tpu.memory_space<vmem>>, vector<8x8x16xbf16>,
    %c0_8 = arith.constant 0 : index
    %c0_9 = arith.constant 0 : index
    %c0_10 = arith.constant 0 : index
    %5 = vector.load %arg8[%c0_8, %c0_9, %c0_10] : memref<10x10x16xbf16, #tpu.memory_space<vmem>>, vector<8x8x16xbf16>
    %6 = vector.shape_cast %5 : vector<8x8x16xbf16> to vector<64x16xbf16>
    %c0_11 = arith.constant 0 : index
    %c1_12 = arith.constant 1 : index
    %c0_13 = arith.constant 0 : index
    %7 = vector.load %arg8[%c0_11, %c1_12, %c0_13] : memref<10x10x16xbf16, #tpu.memory_space<vmem>>, vector<8x8x16xbf16>
    %8 = vector.shape_cast %7 : vector<8x8x16xbf16> to vector<64x16xbf16>
    %c0_14 = arith.constant 0 : index
    %c2 = arith.constant 2 : index
    %c0_15 = arith.constant 0 : index
    %9 = vector.load %arg8[%c0_14, %c2, %c0_15] : memref<10x10x16xbf16, #tpu.memory_space<vmem>>, vector<8x8x16xbf16>
    %10 = vector.shape_cast %9 : vector<8x8x16xbf16> to vector<64x16xbf16>
    %c1_16 = arith.constant 1 : index
    %c0_17 = arith.constant 0 : index
    %c0_18 = arith.constant 0 : index
    %11 = vector.load %arg8[%c1_16, %c0_17, %c0_18] : memref<10x10x16xbf16, #tpu.memory_space<vmem>>, vector<8x8x16xbf16>
    %12 = vector.shape_cast %11 : vector<8x8x16xbf16> to vector<64x16xbf16>
    %c1_19 = arith.constant 1 : index
    %c1_20 = arith.constant 1 : index
    %c0_21 = arith.constant 0 : index
    %13 = vector.load %arg8[%c1_19, %c1_20, %c0_21] : memref<10x10x16xbf16, #tpu.memory_space<vmem>>, vector<8x8x16xbf16>
    %14 = vector.shape_cast %13 : vector<8x8x16xbf16> to vector<64x16xbf16>
    %c1_22 = arith.constant 1 : index
    %c2_23 = arith.constant 2 : index
    %c0_24 = arith.constant 0 : index
    %15 = vector.load %arg8[%c1_22, %c2_23, %c0_24] : memref<10x10x16xbf16, #tpu.memory_space<vmem>>, vector<8x8x16xbf16>
    %16 = vector.shape_cast %15 : vector<8x8x16xbf16> to vector<64x16xbf16>
    %c2_25 = arith.constant 2 : index
    %c0_26 = arith.constant 0 : index
    %c0_27 = arith.constant 0 : index
    %17 = vector.load %arg8[%c2_25, %c0_26, %c0_27] : memref<10x10x16xbf16, #tpu.memory_space<vmem>>, vector<8x8x16xbf16>
    %18 = vector.shape_cast %17 : vector<8x8x16xbf16> to vector<64x16xbf16>
    %c2_28 = arith.constant 2 : index
    %c1_29 = arith.constant 1 : index
    %c0_30 = arith.constant 0 : index
    %19 = vector.load %arg8[%c2_28, %c1_29, %c0_30] : memref<10x10x16xbf16, #tpu.memory_space<vmem>>, vector<8x8x16xbf16>
    %20 = vector.shape_cast %19 : vector<8x8x16xbf16> to vector<64x16xbf16>
    %c2_31 = arith.constant 2 : index
    %c2_32 = arith.constant 2 : index
    %c0_33 = arith.constant 0 : index
    %21 = vector.load %arg8[%c2_31, %c2_32, %c0_33] : memref<10x10x16xbf16, #tpu.memory_space<vmem>>, vector<8x8x16xbf16>
    %22 = vector.shape_cast %21 : vector<8x8x16xbf16> to vector<64x16xbf16>
    %23 = tpu.concatenate %6, %8, %10, %12, %14, %16, %18, %20, %22 in 1 : vector<64x16xbf16>, vector<64x16xbf16>, vector<64x16xbf16>, vector<64x16xbf16>, vector<64x16xbf16>, vector<64x16xbf16>, vector<64x16xbf16>, vector<64x16xbf16>, vector<64x16xbf16> -> vector<64x144xbf16>
    %c0_34 = arith.constant 0 : index
    %c0_35 = arith.constant 0 : index
    %24 = vector.load %arg2[%c0_34, %c0_35] : memref<144x8xbf16, #tpu.memory_space<vmem>>, vector<144x8xbf16>
    %cst_36 = arith.constant dense<0.000000e+00> : vector<64x8xf32>
    %25 = tpu.matmul %23, %24, %cst_36 {dimension_numbers = #tpu.dot_dimension_numbers<[1], [0], [0], [1], [0, 0, 1, 1], [], []>} : vector<64x144xbf16>, vector<144x8xbf16>, vector<64x8xf32> -> vector<64x8xf32>
    %c0_37 = arith.constant 0 : index
    %c0_38 = arith.constant 0 : index
    %26 = vector.load %arg3[%c0_37, %c0_38] : memref<1x8xf32, #tpu.memory_space<vmem>>, vector<1x8xf32>
    %27 = vector.broadcast %26 : vector<1x8xf32> to vector<64x8xf32>
    %28 = arith.addf %25, %27 : vector<64x8xf32>
    %cst_39 = arith.constant 0.000000e+00 : f32
    %29 = vector.broadcast %cst_39 : f32 to vector<64x8xf32>
    %30 = arith.maximumf %28, %29 : vector<64x8xf32>
    %cst_40 = arith.constant 0.000000e+00 : bf16
    %31 = vector.broadcast %cst_40 : bf16 to vector<10x10x8xbf16>
    %c0_41 = arith.constant 0 : index
    %c0_42 = arith.constant 0 : index
    %c0_43 = arith.constant 0 : index
    %32 = vector.load %arg9[%c0_41, %c0_42, %c0_43] : memref<10x10x8xbf16, #tpu.memory_space<vmem>>, vector<10x10x8xbf16>
    tpu.vector_store %arg9[%c0_41, %c0_42, %c0_43], %31 {strides = array<i32>} : memref<10x10x8xbf16, #tpu.memory_space<vmem>>, vector<10x10x8xbf16>,
    %33 = arith.truncf %30 : vector<64x8xf32> to vector<64x8xbf16>
    %34 = vector.shape_cast %33 : vector<64x8xbf16> to vector<8x8x8xbf16>
    %c1_44 = arith.constant 1 : index
    %c1_45 = arith.constant 1 : index
    %c0_46 = arith.constant 0 : index
    %35 = vector.load %arg9[%c1_44, %c1_45, %c0_46] : memref<10x10x8xbf16, #tpu.memory_space<vmem>>, vector<8x8x8xbf16>
    tpu.vector_store %arg9[%c1_44, %c1_45, %c0_46], %34 {strides = array<i32>} : memref<10x10x8xbf16, #tpu.memory_space<vmem>>, vector<8x8x8xbf16>,
    %c0_47 = arith.constant 0 : index
    %c0_48 = arith.constant 0 : index
    %c0_49 = arith.constant 0 : index
    %36 = vector.load %arg9[%c0_47, %c0_48, %c0_49] : memref<10x10x8xbf16, #tpu.memory_space<vmem>>, vector<8x8x8xbf16>
    %37 = vector.shape_cast %36 : vector<8x8x8xbf16> to vector<64x8xbf16>
    %c0_50 = arith.constant 0 : index
    %c1_51 = arith.constant 1 : index
    %c0_52 = arith.constant 0 : index
    %38 = vector.load %arg9[%c0_50, %c1_51, %c0_52] : memref<10x10x8xbf16, #tpu.memory_space<vmem>>, vector<8x8x8xbf16>
    %39 = vector.shape_cast %38 : vector<8x8x8xbf16> to vector<64x8xbf16>
    %c0_53 = arith.constant 0 : index
    %c2_54 = arith.constant 2 : index
    %c0_55 = arith.constant 0 : index
    %40 = vector.load %arg9[%c0_53, %c2_54, %c0_55] : memref<10x10x8xbf16, #tpu.memory_space<vmem>>, vector<8x8x8xbf16>
    %41 = vector.shape_cast %40 : vector<8x8x8xbf16> to vector<64x8xbf16>
    %c1_56 = arith.constant 1 : index
    %c0_57 = arith.constant 0 : index
    %c0_58 = arith.constant 0 : index
    %42 = vector.load %arg9[%c1_56, %c0_57, %c0_58] : memref<10x10x8xbf16, #tpu.memory_space<vmem>>, vector<8x8x8xbf16>
    %43 = vector.shape_cast %42 : vector<8x8x8xbf16> to vector<64x8xbf16>
    %c1_59 = arith.constant 1 : index
    %c1_60 = arith.constant 1 : index
    %c0_61 = arith.constant 0 : index
    %44 = vector.load %arg9[%c1_59, %c1_60, %c0_61] : memref<10x10x8xbf16, #tpu.memory_space<vmem>>, vector<8x8x8xbf16>
    %45 = vector.shape_cast %44 : vector<8x8x8xbf16> to vector<64x8xbf16>
    %c1_62 = arith.constant 1 : index
    %c2_63 = arith.constant 2 : index
    %c0_64 = arith.constant 0 : index
    %46 = vector.load %arg9[%c1_62, %c2_63, %c0_64] : memref<10x10x8xbf16, #tpu.memory_space<vmem>>, vector<8x8x8xbf16>
    %47 = vector.shape_cast %46 : vector<8x8x8xbf16> to vector<64x8xbf16>
    %c2_65 = arith.constant 2 : index
    %c0_66 = arith.constant 0 : index
    %c0_67 = arith.constant 0 : index
    %48 = vector.load %arg9[%c2_65, %c0_66, %c0_67] : memref<10x10x8xbf16, #tpu.memory_space<vmem>>, vector<8x8x8xbf16>
    %49 = vector.shape_cast %48 : vector<8x8x8xbf16> to vector<64x8xbf16>
    %c2_68 = arith.constant 2 : index
    %c1_69 = arith.constant 1 : index
    %c0_70 = arith.constant 0 : index
    %50 = vector.load %arg9[%c2_68, %c1_69, %c0_70] : memref<10x10x8xbf16, #tpu.memory_space<vmem>>, vector<8x8x8xbf16>
    %51 = vector.shape_cast %50 : vector<8x8x8xbf16> to vector<64x8xbf16>
    %c2_71 = arith.constant 2 : index
    %c2_72 = arith.constant 2 : index
    %c0_73 = arith.constant 0 : index
    %52 = vector.load %arg9[%c2_71, %c2_72, %c0_73] : memref<10x10x8xbf16, #tpu.memory_space<vmem>>, vector<8x8x8xbf16>
    %53 = vector.shape_cast %52 : vector<8x8x8xbf16> to vector<64x8xbf16>
    %54 = tpu.concatenate %37, %39, %41, %43, %45, %47, %49, %51, %53 in 1 : vector<64x8xbf16>, vector<64x8xbf16>, vector<64x8xbf16>, vector<64x8xbf16>, vector<64x8xbf16>, vector<64x8xbf16>, vector<64x8xbf16>, vector<64x8xbf16>, vector<64x8xbf16> -> vector<64x72xbf16>
    %c0_74 = arith.constant 0 : index
    %c0_75 = arith.constant 0 : index
    %55 = vector.load %arg4[%c0_74, %c0_75] : memref<72x16xbf16, #tpu.memory_space<vmem>>, vector<72x16xbf16>
    %cst_76 = arith.constant dense<0.000000e+00> : vector<64x16xf32>
    %56 = tpu.matmul %54, %55, %cst_76 {dimension_numbers = #tpu.dot_dimension_numbers<[1], [0], [0], [1], [0, 0, 1, 1], [], []>} : vector<64x72xbf16>, vector<72x16xbf16>, vector<64x16xf32> -> vector<64x16xf32>
    %c0_77 = arith.constant 0 : index
    %c0_78 = arith.constant 0 : index
    %57 = vector.load %arg5[%c0_77, %c0_78] : memref<1x16xf32, #tpu.memory_space<vmem>>, vector<1x16xf32>
    %58 = vector.broadcast %57 : vector<1x16xf32> to vector<64x16xf32>
    %59 = arith.addf %56, %58 : vector<64x16xf32>
    %60 = arith.truncf %59 : vector<64x16xf32> to vector<64x16xbf16>
    %c0_79 = arith.constant 0 : index
    %c0_80 = arith.constant 0 : index
    %c0_81 = arith.constant 0 : index
    %61 = vector.load %arg6[%c0_79, %c0_80, %c0_81] : memref<1x64x16xbf16, #tpu.memory_space<vmem>>, vector<1x64x16xbf16>
    %62 = vector.shape_cast %61 : vector<1x64x16xbf16> to vector<64x16xbf16>
    %63 = vector.shape_cast %60 : vector<64x16xbf16> to vector<1x64x16xbf16>
    tpu.vector_store %arg6[%c0_79, %c0_80, %c0_81], %63 {strides = array<i32>} : memref<1x64x16xbf16, #tpu.memory_space<vmem>>, vector<1x64x16xbf16>,
    %cst_82 = arith.constant dense<0.000000e+00> : vector<16xf32>
    %64 = vector.multi_reduction <add>, %59, %cst_82 [0] : vector<64x16xf32> to vector<16xf32>
    %65 = vector.shape_cast %64 : vector<16xf32> to vector<1x16xf32>
    %66 = arith.mulf %59, %59 : vector<64x16xf32>
    %cst_83 = arith.constant dense<0.000000e+00> : vector<16xf32>
    %67 = vector.multi_reduction <add>, %66, %cst_83 [0] : vector<64x16xf32> to vector<16xf32>
    %68 = vector.shape_cast %67 : vector<16xf32> to vector<1x16xf32>
    %69 = tpu.concatenate %65, %68 in 1 : vector<1x16xf32>, vector<1x16xf32> -> vector<1x32xf32>
    %c0_84 = arith.constant 0 : index
    %c0_85 = arith.constant 0 : index
    %c0_86 = arith.constant 0 : index
    %70 = vector.load %arg7[%c0_84, %c0_85, %c0_86] : memref<1x1x32xf32, #tpu.memory_space<vmem>>, vector<1x1x32xf32>
    %71 = vector.shape_cast %70 : vector<1x1x32xf32> to vector<1x32xf32>
    %72 = vector.shape_cast %69 : vector<1x32xf32> to vector<1x1x32xf32>
    tpu.vector_store %arg7[%c0_84, %c0_85, %c0_86], %72 {strides = array<i32>} : memref<1x1x32xf32, #tpu.memory_space<vmem>>, vector<1x1x32xf32>,
    return
  }
  func.func @transform_0(%arg0: i32) -> (i32, i32, i32, i32) {
    %c0_i32 = arith.constant 0 : i32
    %c0_i32_0 = arith.constant 0 : i32
    %c0_i32_1 = arith.constant 0 : i32
    %c0_i32_2 = arith.constant 0 : i32
    return %arg0, %c0_i32, %c0_i32_0, %c0_i32_1 : i32, i32, i32, i32
  }
  func.func @transform_1(%arg0: i32) -> (i32, i32) {
    %c0_i32 = arith.constant 0 : i32
    %c0_i32_0 = arith.constant 0 : i32
    %c0_i32_1 = arith.constant 0 : i32
    return %c0_i32, %c0_i32_0 : i32, i32
  }
  func.func @transform_2(%arg0: i32) -> (i32, i32) {
    %c0_i32 = arith.constant 0 : i32
    %c0_i32_0 = arith.constant 0 : i32
    %c0_i32_1 = arith.constant 0 : i32
    return %c0_i32, %c0_i32_0 : i32, i32
  }
  func.func @transform_3(%arg0: i32) -> (i32, i32) {
    %c0_i32 = arith.constant 0 : i32
    %c0_i32_0 = arith.constant 0 : i32
    %c0_i32_1 = arith.constant 0 : i32
    return %c0_i32, %c0_i32_0 : i32, i32
  }
  func.func @transform_4(%arg0: i32) -> (i32, i32) {
    %c0_i32 = arith.constant 0 : i32
    %c0_i32_0 = arith.constant 0 : i32
    %c0_i32_1 = arith.constant 0 : i32
    return %c0_i32, %c0_i32_0 : i32, i32
  }
  func.func @transform_5(%arg0: i32) -> (i32, i32, i32) {
    %c0_i32 = arith.constant 0 : i32
    %c0_i32_0 = arith.constant 0 : i32
    %c0_i32_1 = arith.constant 0 : i32
    return %arg0, %c0_i32, %c0_i32_0 : i32, i32, i32
  }
  func.func @transform_6(%arg0: i32) -> (i32, i32, i32) {
    %c0_i32 = arith.constant 0 : i32
    %c0_i32_0 = arith.constant 0 : i32
    %c0_i32_1 = arith.constant 0 : i32
    return %arg0, %c0_i32, %c0_i32_0 : i32, i32, i32
  }
}

</mosaic_0001>

<llo_original>
// kernel: tile.17
$region0: #{tile.17}
  #allocation0 [shape = 's32[1]{0}', space=sflag, size = 0x4, scoped, tag = 'scoped memory for tile.17']
  %s0 = inlined_call_operand.vmem [shape: f32[4], index: 0, kind: input, shape index: {}]
  %s1 = inlined_call_operand.vmem [shape: f32[4,4], index: 1, kind: output, shape index: {}]
  // Predicated region
  $region2: #{tile.17} parent=0 // pred_check
    _
  $region3: #{tile.17} parent=0 // pred_check_branch
    %3 = sbr.rel (0) target = $region5
  $region4: #{tile.17} parent=0 // pred_region
    _
  $region5: #{tile.17} parent=0 // pred_fallthru
    _
  %v4 = vld [vmem:[%s0] ss:$0 sm:$0xff]
  %5 = vst [vmem:[%s1] sm:$0xf] %v4

// kernel: unet_block_innermost_pallas.1
$region0: #{unet_block_innermost_pallas.1}
  #allocation0 [shape = 'u32[]', space=smem, size = 0x4, offset = 0x4, fixed_abs, tag = 'smem constant byte address 0x4 - core index']
  #allocation1 [shape = 'u32[144,128]{1,0:T(1,128)}', space=vmem, size = 0x12000, scoped, tag = 'internal scratch']
  #allocation2 [shape = 'bf16[10,10,16]{2,1,0:T(8,128)(2,1)}', space=vmem, size = 0xa000, scoped, tag = 'scratch operand']
  #allocation3 [shape = 'bf16[10,10,8]{2,1,0:T(8,128)(2,1)}', space=vmem, size = 0xa000, scoped, tag = 'scratch operand']
  %s0 = inlined_call_operand.vmem [shape: bf16[2,8,8,16], index: 0, kind: input, shape index: {}]
  %s1 = inlined_call_operand.vmem [shape: bf16[144,8], index: 1, kind: input, shape index: {}]
  %s2 = inlined_call_operand.vmem [shape: f32[1,8], index: 2, kind: input, shape index: {}]
  %s3 = inlined_call_operand.vmem [shape: bf16[72,16], index: 3, kind: input, shape index: {}]
  %s4 = inlined_call_operand.vmem [shape: f32[1,16], index: 4, kind: input, shape index: {}]
  %s5 = inlined_call_operand.vmem [shape: bf16[2,64,16], index: 5, kind: output, shape index: {0}]
  %s6 = inlined_call_operand.vmem [shape: f32[2,1,32], index: 6, kind: output, shape index: {1}]
  %7 = xla_tuple %s5, %s6
  %s8 = sld [smem:[#allocation0]]
  $region61: #{unet_block_innermost_pallas.1} parent=0
    _
  %s10 = ssub.s32 1, %s8
  %s11 = scalar_select 0, %s10, %s8
  loop: start=0, step=1, limit=4
  $region2: #{unet_block_innermost_pallas.1} parent=0 // loop_pre_header
    _
  $region3: #{unet_block_innermost_pallas.1} parent=0 // loop_header
    %s13 = sphi 0, %s17
    %p14 = scmp.ge.s32.totalorder %s13, 4
    %s23 = sphi 0, %s25
    %s26 = sphi 0, %s23
    %s27 = sphi 0, %s26
    %s43 = sphi 0, %s27
    %s47 = sphi 0, %s47
    %s49 = sphi 0, %s47
    %s50 = sphi 0, %s49
    %s64 = sphi 0, %s50
    %s68 = sphi 0, %s68
    %s70 = sphi 0, %s68
    %s71 = sphi 0, %s70
    %s85 = sphi 0, %s71
    %s89 = sphi 0, %s89
    %s91 = sphi 0, %s89
    %s92 = sphi 0, %s91
    %s106 = sphi 0, %s92
    %s110 = sphi 0, %s110
    %s112 = sphi 0, %s110
    %s113 = sphi 0, %s112
    %s127 = sphi 0, %s113
    %s133 = sphi 0, %s135
    %s136 = sphi 0, %s133
    %s137 = sphi 0, %s136
    %s153 = sphi 0, %s137
    %s159 = sphi 0, %s161
    %s162 = sphi 0, %s159
    %s163 = sphi 0, %s162
    %s179 = sphi 0, %s163
  $region4: #{unet_block_innermost_pallas.1} parent=0 // loop_header_branch
    %16 = sbr.rel (%p14) target = $region8
  $region5: #{unet_block_innermost_pallas.1} parent=0 // loop_body
    %s18 = ssub.s32 %s13, 1
    %s19 = ssub.s32 %s13, 2
    %s20 = sadd.s32 %s13, 1
    %s21 = ssub.s32 %s13, %s20
    %p22 = scmp.eq.s32.totalorder %s21, 0
    %s24 = sadd.s32 %s23, 1
    %s25 = scalar_select %p22, %s23, %s24
    %p28 = pneg %p22
    %p29 = scmp.eq.s32.totalorder %s13, 1
    %p30 = por %p28, %p29
    %p31 = scmp.ne.s32.totalorder %s23, %s26
    %p32 = scmp.eq.s32.totalorder %s13, 0
    %p33 = por %p31, %p32
    %p34 = scmp.ne.s32.totalorder %s23, %s26
    %p35 = scmp.eq.s32.totalorder %s18, 1
    %p36 = por %p34, %p35
    %p37 = scmp.ne.s32.totalorder %s26, %s27
    %p38 = scmp.eq.s32.totalorder %s18, 0
    %p39 = por %p37, %p38
    %p40 = scmp.ne.s32.totalorder %s26, %s27
    %p41 = scmp.eq.s32.totalorder %s19, 1
    %p42 = por %p40, %p41
    %p44 = scmp.ne.s32.totalorder %s27, %s43
    %p45 = scmp.eq.s32.totalorder %s19, 0
    %p46 = por %p44, %p45
    %s48 = sadd.s32 %s47, 1
    %p51 = scmp.eq.s32.totalorder %s13, 1
    %p52 = scmp.ne.s32.totalorder %s47, %s49
    %p53 = scmp.eq.s32.totalorder %s13, 0
    %p54 = por %p52, %p53
    %p55 = scmp.ne.s32.totalorder %s47, %s49
    %p56 = scmp.eq.s32.totalorder %s18, 1
    %p57 = por %p55, %p56
    %p58 = scmp.ne.s32.totalorder %s49, %s50
    %p59 = scmp.eq.s32.totalorder %s18, 0
    %p60 = por %p58, %p59
    %p61 = scmp.ne.s32.totalorder %s49, %s50
    %p62 = scmp.eq.s32.totalorder %s19, 1
    %p63 = por %p61, %p62
    %p65 = scmp.ne.s32.totalorder %s50, %s64
    %p66 = scmp.eq.s32.totalorder %s19, 0
    %p67 = por %p65, %p66
    %s69 = sadd.s32 %s68, 1
    %p72 = scmp.eq.s32.totalorder %s13, 1
    %p73 = scmp.ne.s32.totalorder %s68, %s70
    %p74 = scmp.eq.s32.totalorder %s13, 0
    %p75 = por %p73, %p74
    %p76 = scmp.ne.s32.totalorder %s68, %s70
    %p77 = scmp.eq.s32.totalorder %s18, 1
    %p78 = por %p76, %p77
    %p79 = scmp.ne.s32.totalorder %s70, %s71
    %p80 = scmp.eq.s32.totalorder %s18, 0
    %p81 = por %p79, %p80
    %p82 = scmp.ne.s32.totalorder %s70, %s71
    %p83 = scmp.eq.s32.totalorder %s19, 1
    %p84 = por %p82, %p83
    %p86 = scmp.ne.s32.totalorder %s71, %s85
    %p87 = scmp.eq.s32.totalorder %s19, 0
    %p88 = por %p86, %p87
    %s90 = sadd.s32 %s89, 1
    %p93 = scmp.eq.s32.totalorder %s13, 1
    %p94 = scmp.ne.s32.totalorder %s89, %s91
    %p95 = scmp.eq.s32.totalorder %s13, 0
    %p96 = por %p94, %p95
    %p97 = scmp.ne.s32.totalorder %s89, %s91
    %p98 = scmp.eq.s32.totalorder %s18, 1
    %p99 = por %p97, %p98
    %p100 = scmp.ne.s32.totalorder %s91, %s92
    %p101 = scmp.eq.s32.totalorder %s18, 0
    %p102 = por %p100, %p101
    %p103 = scmp.ne.s32.totalorder %s91, %s92
    %p104 = scmp.eq.s32.totalorder %s19, 1
    %p105 = por %p103, %p104
    %p107 = scmp.ne.s32.totalorder %s92, %s106
    %p108 = scmp.eq.s32.totalorder %s19, 0
    %p109 = por %p107, %p108
    %s111 = sadd.s32 %s110, 1
    %p114 = scmp.eq.s32.totalorder %s13, 1
    %p115 = scmp.ne.s32.totalorder %s110, %s112
    %p116 = scmp.eq.s32.totalorder %s13, 0
    %p117 = por %p115, %p116
    %p118 = scmp.ne.s32.totalorder %s110, %s112
    %p119 = scmp.eq.s32.totalorder %s18, 1
    %p120 = por %p118, %p119
    %p121 = scmp.ne.s32.totalorder %s112, %s113
    %p122 = scmp.eq.s32.totalorder %s18, 0
    %p123 = por %p121, %p122
    %p124 = scmp.ne.s32.totalorder %s112, %s113
    %p125 = scmp.eq.s32.totalorder %s19, 1
    %p126 = por %p124, %p125
    %p128 = scmp.ne.s32.totalorder %s113, %s127
    %p129 = scmp.eq.s32.totalorder %s19, 0
    %p130 = por %p128, %p129
    %s131 = ssub.s32 %s13, %s20
    %p132 = scmp.eq.s32.totalorder %s131, 0
    %s134 = sadd.s32 %s133, 1
    %s135 = scalar_select %p132, %s133, %s134
    %p138 = pneg %p132
    %p139 = scmp.eq.s32.totalorder %s13, 1
    %p140 = por %p138, %p139
    %p141 = scmp.ne.s32.totalorder %s133, %s136
    %p142 = scmp.eq.s32.totalorder %s13, 0
    %p143 = por %p141, %p142
    %p144 = scmp.ne.s32.totalorder %s133, %s136
    %p145 = scmp.eq.s32.totalorder %s18, 1
    %p146 = por %p144, %p145
    %p147 = scmp.ne.s32.totalorder %s136, %s137
    %p148 = scmp.eq.s32.totalorder %s18, 0
    %p149 = por %p147, %p148
    %p150 = scmp.ne.s32.totalorder %s136, %s137
    %p151 = scmp.eq.s32.totalorder %s19, 1
    %p152 = por %p150, %p151
    %p154 = scmp.ne.s32.totalorder %s137, %s153
    %p155 = scmp.eq.s32.totalorder %s19, 0
    %p156 = por %p154, %p155
    %s157 = ssub.s32 %s13, %s20
    %p158 = scmp.eq.s32.totalorder %s157, 0
    %s160 = sadd.s32 %s159, 1
    %s161 = scalar_select %p158, %s159, %s160
    %p164 = pneg %p158
    %p165 = scmp.eq.s32.totalorder %s13, 1
    %p166 = por %p164, %p165
    %p167 = scmp.ne.s32.totalorder %s159, %s162
    %p168 = scmp.eq.s32.totalorder %s13, 0
    %p169 = por %p167, %p168
    %p170 = scmp.ne.s32.totalorder %s159, %s162
    %p171 = scmp.eq.s32.totalorder %s18, 1
    %p172 = por %p170, %p171
    %p173 = scmp.ne.s32.totalorder %s162, %s163
    %p174 = scmp.eq.s32.totalorder %s18, 0
    %p175 = por %p173, %p174
    %p176 = scmp.ne.s32.totalorder %s162, %s163
    %p177 = scmp.eq.s32.totalorder %s19, 1
    %p178 = por %p176, %p177
    %p180 = scmp.ne.s32.totalorder %s163, %s179
    %p181 = scmp.eq.s32.totalorder %s19, 0
    %p182 = por %p180, %p181
    %p183 = scmp.le.s32.totalorder 1, %s13
    %p184 = scmp.lt.s32.totalorder %s13, 3
    %p185 = pnand %p183, %p184
    %p186 = pneg %p185
    // Predicated region
    $region9: #{unet_block_innermost_pallas.1} parent=5 // pred_check
      _
    $region10: #{unet_block_innermost_pallas.1} parent=5 // pred_check_branch
      %188 = sbr.rel (%p185) target = $region12
    $region11: #{unet_block_innermost_pallas.1} parent=5 // pred_region
      %s189 = ssub.s32 %s13, 1
      // Predicated region
      $region13: #{unet_block_innermost_pallas.1} parent=11 // pred_check
        %p190 = pneg %p60
      $region14: #{unet_block_innermost_pallas.1} parent=11 // pred_check_branch
        %192 = sbr.rel (%p190) target = $region16
      $region15: #{unet_block_innermost_pallas.1} parent=11 // pred_region
        _
      $region16: #{unet_block_innermost_pallas.1} parent=11 // pred_fallthru
        _
      // Predicated region
      $region17: #{unet_block_innermost_pallas.1} parent=11 // pred_check
        %p193 = pneg %p81
      $region18: #{unet_block_innermost_pallas.1} parent=11 // pred_check_branch
        %195 = sbr.rel (%p193) target = $region20
      $region19: #{unet_block_innermost_pallas.1} parent=11 // pred_region
        _
      $region20: #{unet_block_innermost_pallas.1} parent=11 // pred_fallthru
        _
      // Predicated region
      $region21: #{unet_block_innermost_pallas.1} parent=11 // pred_check
        %p196 = pneg %p102
      $region22: #{unet_block_innermost_pallas.1} parent=11 // pred_check_branch
        %198 = sbr.rel (%p196) target = $region24
      $region23: #{unet_block_innermost_pallas.1} parent=11 // pred_region
        _
      $region24: #{unet_block_innermost_pallas.1} parent=11 // pred_fallthru
        _
      // Predicated region
      $region25: #{unet_block_innermost_pallas.1} parent=11 // pred_check
        %p199 = pneg %p123
      $region26: #{unet_block_innermost_pallas.1} parent=11 // pred_check_branch
        %201 = sbr.rel (%p199) target = $region28
      $region27: #{unet_block_innermost_pallas.1} parent=11 // pred_region
        _
      $region28: #{unet_block_innermost_pallas.1} parent=11 // pred_fallthru
        _
    $region12: #{unet_block_innermost_pallas.1} parent=5 // pred_fallthru
      _
    %p202 = scmp.lt.s32.totalorder %s13, 2
    // Predicated region
    $region29: #{unet_block_innermost_pallas.1} parent=5 // pred_check
      %p203 = pneg %p202
    $region30: #{unet_block_innermost_pallas.1} parent=5 // pred_check_branch
      %205 = sbr.rel (%p203) target = $region32
    $region31: #{unet_block_innermost_pallas.1} parent=5 // pred_region
      // Predicated region
      $region33: #{unet_block_innermost_pallas.1} parent=31 // pred_check
        %p206 = pneg %p33
      $region34: #{unet_block_innermost_pallas.1} parent=31 // pred_check_branch
        %208 = sbr.rel (%p206) target = $region36
      $region35: #{unet_block_innermost_pallas.1} parent=31 // pred_region
        %p209 = scmp.lt.s32.totalorder %s13, 1
        %s210 = scalar_select %p209, %s13, 1
        %s211 = smul.addr %s210, 8
        %s212 = smul.addr %s211, 4
        %s213 = scalar_lea.vmem %s0, %s212
      $region36: #{unet_block_innermost_pallas.1} parent=31 // pred_fallthru
        _
    $region32: #{unet_block_innermost_pallas.1} parent=5 // pred_fallthru
      _
    %p214 = scmp.le.s32.totalorder 1, %s13
    %p215 = scmp.lt.s32.totalorder %s13, 3
    %p216 = pnand %p214, %p215
    %p217 = pneg %p216
    // Predicated region
    $region37: #{unet_block_innermost_pallas.1} parent=5 // pred_check
      _
    $region38: #{unet_block_innermost_pallas.1} parent=5 // pred_check_branch
      %219 = sbr.rel (%p216) target = $region40
    $region39: #{unet_block_innermost_pallas.1} parent=5 // pred_region
      %s220 = ssub.s32 %s13, 1
      %p221 = scmp.lt.s32.totalorder %s18, 1
      %s222 = scalar_select %p221, %s18, 1
      %s223 = smul.addr %s222, 8
      %s224 = smul.addr %s223, 4
      %s225 = scalar_lea.vmem %s0, %s224
      %p226 = pneg %p39
      %p227 = pneg %p36
      %p228 = pneg %p60
      %p229 = pneg %p57
      %p230 = pneg %p81
      %p231 = pneg %p78
      %p232 = pneg %p102
      %p233 = pneg %p99
      %p234 = pneg %p123
      %p235 = pneg %p120
      %p236 = pneg %p149
      %p237 = pneg %p146
      %p238 = scmp.lt.s32.totalorder %s18, 1
      %s239 = scalar_select %p238, %s18, 1
      %s240 = smul.addr %s239, 8
      %s241 = smul.addr %s240, 4
      %s242 = scalar_lea.vmem %s5, %s241
      %p243 = pneg %p175
      %p244 = pneg %p172
      %p245 = scmp.lt.s32.totalorder %s18, 1
      %s246 = scalar_select %p245, %s18, 1
      %s247 = scalar_lea.vmem %s6, %s246
      %p248 = scmp.lt.s32.totalorder %s18, 1
      %s249 = scalar_select %p248, %s18, 1
      %s250 = smul.addr %s249, 8
      %s251 = smul.addr %s250, 4
      %s252 = scalar_lea.vmem %s0, %s251
      %p253 = scmp.lt.s32.totalorder %s18, 1
      %s254 = scalar_select %p253, %s18, 1
      %s255 = smul.addr %s254, 8
      %s256 = smul.addr %s255, 4
      %s257 = scalar_lea.vmem %s5, %s256
      %p258 = scmp.lt.s32.totalorder %s18, 1
      %s259 = scalar_select %p258, %s18, 1
      %s260 = scalar_lea.vmem %s6, %s259
      %vm262 = vcmask 125952
      %263 = vst.msk [vmem:[#allocation2] sm:$0xf] %vm262, 0
      %vm264 = vcmask 122880
      %265 = vst.msk [vmem:[#allocation2 + $0x4] sm:$0x1] %vm264, 0
      %266 = vst.msk [vmem:[#allocation2 + $0x8] sm:$0xf] %vm262, 0
      %267 = vst.msk [vmem:[#allocation2 + $0xc] sm:$0x1] %vm264, 0
      %268 = vst.msk [vmem:[#allocation2 + $0x10] sm:$0xf] %vm262, 0
      %269 = vst.msk [vmem:[#allocation2 + $0x14] sm:$0x1] %vm264, 0
      %270 = vst.msk [vmem:[#allocation2 + $0x18] sm:$0xf] %vm262, 0
      %271 = vst.msk [vmem:[#allocation2 + $0x1c] sm:$0x1] %vm264, 0
      %272 = vst.msk [vmem:[#allocation2 + $0x20] sm:$0xf] %vm262, 0
      %273 = vst.msk [vmem:[#allocation2 + $0x24] sm:$0x1] %vm264, 0
      %274 = vst.msk [vmem:[#allocation2 + $0x28] sm:$0xf] %vm262, 0
      %275 = vst.msk [vmem:[#allocation2 + $0x2c] sm:$0x1] %vm264, 0
      %276 = vst.msk [vmem:[#allocation2 + $0x30] sm:$0xf] %vm262, 0
      %277 = vst.msk [vmem:[#allocation2 + $0x34] sm:$0x1] %vm264, 0
      %278 = vst.msk [vmem:[#allocation2 + $0x38] sm:$0xf] %vm262, 0
      %279 = vst.msk [vmem:[#allocation2 + $0x3c] sm:$0x1] %vm264, 0
      %280 = vst.msk [vmem:[#allocation2 + $0x40] sm:$0xf] %vm262, 0
      %281 = vst.msk [vmem:[#allocation2 + $0x44] sm:$0x1] %vm264, 0
      %282 = vst.msk [vmem:[#allocation2 + $0x48] sm:$0xf] %vm262, 0
      %283 = vst.msk [vmem:[#allocation2 + $0x4c] sm:$0x1] %vm264, 0
      %v284 = vld [vmem:[%s252] sm:$0xf]
      %v285 = vld [vmem:[%s252 + $0x4] sm:$0xf]
      %v286 = vld [vmem:[%s252 + $0x8] sm:$0xf]
      %v287 = vld [vmem:[%s252 + $0xc] sm:$0xf]
      %v288 = vld [vmem:[%s252 + $0x10] sm:$0xf]
      %v289 = vld [vmem:[%s252 + $0x14] sm:$0xf]
      %v290 = vld [vmem:[%s252 + $0x18] sm:$0xf]
      %v291 = vld [vmem:[%s252 + $0x1c] sm:$0xf]
      %v293 = vshrl.u32 %v284, 16
      %v295 = vrot.slane %v293, 7
      %v296 = vshll.u32 %v284, 16
      %v298 = vor.u32 %v295, %v296
      %v299 = vrot.slane %v295, 4
      %v301 = vshrl.u32 %v285, 16
      %v303 = vrot.slane %v301, 7
      %v304 = vshll.u32 %v285, 16
      %v306 = vor.u32 %v303, %v304
      %v307 = vrot.slane %v303, 4
      %v309 = vshrl.u32 %v286, 16
      %v311 = vrot.slane %v309, 7
      %v312 = vshll.u32 %v286, 16
      %v314 = vor.u32 %v311, %v312
      %v315 = vrot.slane %v311, 4
      %v317 = vshrl.u32 %v287, 16
      %v319 = vrot.slane %v317, 7
      %v320 = vshll.u32 %v287, 16
      %v322 = vor.u32 %v319, %v320
      %v323 = vrot.slane %v319, 4
      %v325 = vshrl.u32 %v288, 16
      %v327 = vrot.slane %v325, 7
      %v328 = vshll.u32 %v288, 16
      %v330 = vor.u32 %v327, %v328
      %v331 = vrot.slane %v327, 4
      %v333 = vshrl.u32 %v289, 16
      %v335 = vrot.slane %v333, 7
      %v336 = vshll.u32 %v289, 16
      %v338 = vor.u32 %v335, %v336
      %v339 = vrot.slane %v335, 4
      %v341 = vshrl.u32 %v290, 16
      %v343 = vrot.slane %v341, 7
      %v344 = vshll.u32 %v290, 16
      %v346 = vor.u32 %v343, %v344
      %v347 = vrot.slane %v343, 4
      %v349 = vshrl.u32 %v291, 16
      %v351 = vrot.slane %v349, 7
      %v352 = vshll.u32 %v291, 16
      %v354 = vor.u32 %v351, %v352
      %v355 = vrot.slane %v351, 4
      %s372 = scalar_lea.vmem [#allocation2], 8
      %vm373 = vcmask 125952
      %vm374 = vsmask.f32 7938
      %vm375 = vmand %vm373, %vm374
      %v376 = vld [vmem:[%s372] sm:$0xf]
      %v377 = vsel %vm375, %v298, %v376
      %378 = vst [vmem:[%s372] sm:$0xf] %v377
      %vm379 = vcmask 122880
      %vm380 = vsmask.f32 256
      %vm381 = vmand %vm379, %vm380
      %v382 = vld [vmem:[%s372 + $0x4] sm:$0x1]
      %v383 = vsel %vm381, %v299, %v382
      %384 = vst [vmem:[%s372 + $0x4] sm:$0x1] %v383
      %v385 = vld [vmem:[%s372 + $0x8] sm:$0xf]
      %v386 = vsel %vm375, %v306, %v385
      %387 = vst [vmem:[%s372 + $0x8] sm:$0xf] %v386
      %v388 = vld [vmem:[%s372 + $0xc] sm:$0x1]
      %v389 = vsel %vm381, %v307, %v388
      %390 = vst [vmem:[%s372 + $0xc] sm:$0x1] %v389
      %v391 = vld [vmem:[%s372 + $0x10] sm:$0xf]
      %v392 = vsel %vm375, %v314, %v391
      %393 = vst [vmem:[%s372 + $0x10] sm:$0xf] %v392
      %v394 = vld [vmem:[%s372 + $0x14] sm:$0x1]
      %v395 = vsel %vm381, %v315, %v394
      %396 = vst [vmem:[%s372 + $0x14] sm:$0x1] %v395
      %v397 = vld [vmem:[%s372 + $0x18] sm:$0xf]
      %v398 = vsel %vm375, %v322, %v397
      %399 = vst [vmem:[%s372 + $0x18] sm:$0xf] %v398
      %v400 = vld [vmem:[%s372 + $0x1c] sm:$0x1]
      %v401 = vsel %vm381, %v323, %v400
      %402 = vst [vmem:[%s372 + $0x1c] sm:$0x1] %v401
      %v403 = vld [vmem:[%s372 + $0x20] sm:$0xf]
      %v404 = vsel %vm375, %v330, %v403
      %405 = vst [vmem:[%s372 + $0x20] sm:$0xf] %v404
      %v406 = vld [vmem:[%s372 + $0x24] sm:$0x1]
      %v407 = vsel %vm381, %v331, %v406
      %408 = vst [vmem:[%s372 + $0x24] sm:$0x1] %v407
      %v409 = vld [vmem:[%s372 + $0x28] sm:$0xf]
      %v410 = vsel %vm375, %v338, %v409
      %411 = vst [vmem:[%s372 + $0x28] sm:$0xf] %v410
      %v412 = vld [vmem:[%s372 + $0x2c] sm:$0x1]
      %v413 = vsel %vm381, %v339, %v412
      %414 = vst [vmem:[%s372 + $0x2c] sm:$0x1] %v413
      %v415 = vld [vmem:[%s372 + $0x30] sm:$0xf]
      %v416 = vsel %vm375, %v346, %v415
      %417 = vst [vmem:[%s372 + $0x30] sm:$0xf] %v416
      %v418 = vld [vmem:[%s372 + $0x34] sm:$0x1]
      %v419 = vsel %vm381, %v347, %v418
      %420 = vst [vmem:[%s372 + $0x34] sm:$0x1] %v419
      %v421 = vld [vmem:[%s372 + $0x38] sm:$0xf]
      %v422 = vsel %vm375, %v354, %v421
      %423 = vst [vmem:[%s372 + $0x38] sm:$0xf] %v422
      %v424 = vld [vmem:[%s372 + $0x3c] sm:$0x1]
      %v425 = vsel %vm381, %v355, %v424
      %426 = vst [vmem:[%s372 + $0x3c] sm:$0x1] %v425
      %v427 = vld [vmem:[#allocation2] sm:$0xf]
      %v428 = vld [vmem:[#allocation2 + $0x8] sm:$0xf]
      %v429 = vld [vmem:[#allocation2 + $0x10] sm:$0xf]
      %v430 = vld [vmem:[#allocation2 + $0x18] sm:$0xf]
      %v431 = vld [vmem:[#allocation2 + $0x20] sm:$0xf]
      %v432 = vld [vmem:[#allocation2 + $0x28] sm:$0xf]
      %v433 = vld [vmem:[#allocation2 + $0x30] sm:$0xf]
      %v434 = vld [vmem:[#allocation2 + $0x38] sm:$0xf]
      %v435 = vld [vmem:[#allocation2 + $0x4] sm:$0x1]
      %v436 = vld [vmem:[#allocation2 + $0xc] sm:$0x1]
      %v437 = vld [vmem:[#allocation2 + $0x14] sm:$0x1]
      %v438 = vld [vmem:[#allocation2 + $0x1c] sm:$0x1]
      %v439 = vld [vmem:[#allocation2 + $0x24] sm:$0x1]
      %v440 = vld [vmem:[#allocation2 + $0x2c] sm:$0x1]
      %v441 = vld [vmem:[#allocation2 + $0x34] sm:$0x1]
      %v442 = vld [vmem:[#allocation2 + $0x3c] sm:$0x1]
      %vm443 = vsmask.f32 3328
      %vm444 = vsmask.f32 7440
      %vm445 = vmor %vm443, %vm444
      %v447 = vshrl.u32 %v427, 16
      %v449 = vrot.slane %v447, 4
      %v450 = vshll.u32 %v427, 16
      %v452 = vrot.slane %v450, 5
      %v453 = vor.u32 %v449, %v452
      %v454 = vrot.slane %v453, 4
      %v456 = vshll.u32 %v435, 16
      %v458 = vrot.slane %v456, 5
      %v459 = vsel %vm445, %v454, %v458
      %v461 = vshrl.u32 %v428, 16
      %v463 = vrot.slane %v461, 4
      %v464 = vshll.u32 %v428, 16
      %v466 = vrot.slane %v464, 5
      %v467 = vor.u32 %v463, %v466
      %v468 = vrot.slane %v467, 4
      %v470 = vshll.u32 %v436, 16
      %v472 = vrot.slane %v470, 5
      %v473 = vsel %vm445, %v468, %v472
      %v475 = vshrl.u32 %v429, 16
      %v477 = vrot.slane %v475, 4
      %v478 = vshll.u32 %v429, 16
      %v480 = vrot.slane %v478, 5
      %v481 = vor.u32 %v477, %v480
      %v482 = vrot.slane %v481, 4
      %v484 = vshll.u32 %v437, 16
      %v486 = vrot.slane %v484, 5
      %v487 = vsel %vm445, %v482, %v486
      %v489 = vshrl.u32 %v430, 16
      %v491 = vrot.slane %v489, 4
      %v492 = vshll.u32 %v430, 16
      %v494 = vrot.slane %v492, 5
      %v495 = vor.u32 %v491, %v494
      %v496 = vrot.slane %v495, 4
      %v498 = vshll.u32 %v438, 16
      %v500 = vrot.slane %v498, 5
      %v501 = vsel %vm445, %v496, %v500
      %v503 = vshrl.u32 %v431, 16
      %v505 = vrot.slane %v503, 4
      %v506 = vshll.u32 %v431, 16
      %v508 = vrot.slane %v506, 5
      %v509 = vor.u32 %v505, %v508
      %v510 = vrot.slane %v509, 4
      %v512 = vshll.u32 %v439, 16
      %v514 = vrot.slane %v512, 5
      %v515 = vsel %vm445, %v510, %v514
      %v517 = vshrl.u32 %v432, 16
      %v519 = vrot.slane %v517, 4
      %v520 = vshll.u32 %v432, 16
      %v522 = vrot.slane %v520, 5
      %v523 = vor.u32 %v519, %v522
      %v524 = vrot.slane %v523, 4
      %v526 = vshll.u32 %v440, 16
      %v528 = vrot.slane %v526, 5
      %v529 = vsel %vm445, %v524, %v528
      %v531 = vshrl.u32 %v433, 16
      %v533 = vrot.slane %v531, 4
      %v534 = vshll.u32 %v433, 16
      %v536 = vrot.slane %v534, 5
      %v537 = vor.u32 %v533, %v536
      %v538 = vrot.slane %v537, 4
      %v540 = vshll.u32 %v441, 16
      %v542 = vrot.slane %v540, 5
      %v543 = vsel %vm445, %v538, %v542
      %v545 = vshrl.u32 %v434, 16
      %v547 = vrot.slane %v545, 4
      %v548 = vshll.u32 %v434, 16
      %v550 = vrot.slane %v548, 5
      %v551 = vor.u32 %v547, %v550
      %v552 = vrot.slane %v551, 4
      %v554 = vshll.u32 %v442, 16
      %v556 = vrot.slane %v554, 5
      %v557 = vsel %vm445, %v552, %v556
      %v558 = vld [vmem:[#allocation2] sm:$0xe]
      %v559 = vld [vmem:[#allocation2 + $0x8] sm:$0xe]
      %v560 = vld [vmem:[#allocation2 + $0x10] sm:$0xe]
      %v561 = vld [vmem:[#allocation2 + $0x18] sm:$0xe]
      %v562 = vld [vmem:[#allocation2 + $0x20] sm:$0xe]
      %v563 = vld [vmem:[#allocation2 + $0x28] sm:$0xe]
      %v564 = vld [vmem:[#allocation2 + $0x30] sm:$0xe]
      %v565 = vld [vmem:[#allocation2 + $0x38] sm:$0xe]
      %vm582 = vcmask 1042432
      %vm583 = vcmask 1046532
      %vm584 = vmor %vm582, %vm583
      %v585 = vrot.slane %v558, 5
      %v586 = vrot.slane %v585, 4
      %v587 = vrot.slane %v435, 5
      %v588 = vsel %vm584, %v586, %v587
      %v589 = vrot.slane %v559, 5
      %v590 = vrot.slane %v589, 4
      %v591 = vrot.slane %v436, 5
      %v592 = vsel %vm584, %v590, %v591
      %v593 = vrot.slane %v560, 5
      %v594 = vrot.slane %v593, 4
      %v595 = vrot.slane %v437, 5
      %v596 = vsel %vm584, %v594, %v595
      %v597 = vrot.slane %v561, 5
      %v598 = vrot.slane %v597, 4
      %v599 = vrot.slane %v438, 5
      %v600 = vsel %vm584, %v598, %v599
      %v601 = vrot.slane %v562, 5
      %v602 = vrot.slane %v601, 4
      %v603 = vrot.slane %v439, 5
      %v604 = vsel %vm584, %v602, %v603
      %v605 = vrot.slane %v563, 5
      %v606 = vrot.slane %v605, 4
      %v607 = vrot.slane %v440, 5
      %v608 = vsel %vm584, %v606, %v607
      %v609 = vrot.slane %v564, 5
      %v610 = vrot.slane %v609, 4
      %v611 = vrot.slane %v441, 5
      %v612 = vsel %vm584, %v610, %v611
      %v613 = vrot.slane %v565, 5
      %v614 = vrot.slane %v613, 4
      %v615 = vrot.slane %v442, 5
      %v616 = vsel %vm584, %v614, %v615
      %v617 = vld [vmem:[%s372] sm:$0xf]
      %v618 = vld [vmem:[%s372 + $0x8] sm:$0xf]
      %v619 = vld [vmem:[%s372 + $0x10] sm:$0xf]
      %v620 = vld [vmem:[%s372 + $0x18] sm:$0xf]
      %v621 = vld [vmem:[%s372 + $0x20] sm:$0xf]
      %v622 = vld [vmem:[%s372 + $0x28] sm:$0xf]
      %v623 = vld [vmem:[%s372 + $0x30] sm:$0xf]
      %v624 = vld [vmem:[%s372 + $0x38] sm:$0xf]
      %v625 = vld [vmem:[%s372 + $0x4] sm:$0x1]
      %v626 = vld [vmem:[%s372 + $0xc] sm:$0x1]
      %v627 = vld [vmem:[%s372 + $0x14] sm:$0x1]
      %v628 = vld [vmem:[%s372 + $0x1c] sm:$0x1]
      %v629 = vld [vmem:[%s372 + $0x24] sm:$0x1]
      %v630 = vld [vmem:[%s372 + $0x2c] sm:$0x1]
      %v631 = vld [vmem:[%s372 + $0x34] sm:$0x1]
      %v632 = vld [vmem:[%s372 + $0x3c] sm:$0x1]
      %v634 = vshrl.u32 %v617, 16
      %v636 = vrot.slane %v634, 4
      %v637 = vshll.u32 %v617, 16
      %v639 = vrot.slane %v637, 5
      %v640 = vor.u32 %v636, %v639
      %v641 = vrot.slane %v640, 4
      %v643 = vshll.u32 %v625, 16
      %v645 = vrot.slane %v643, 5
      %v646 = vsel %vm445, %v641, %v645
      %v648 = vshrl.u32 %v618, 16
      %v650 = vrot.slane %v648, 4
      %v651 = vshll.u32 %v618, 16
      %v653 = vrot.slane %v651, 5
      %v654 = vor.u32 %v650, %v653
      %v655 = vrot.slane %v654, 4
      %v657 = vshll.u32 %v626, 16
      %v659 = vrot.slane %v657, 5
      %v660 = vsel %vm445, %v655, %v659
      %v662 = vshrl.u32 %v619, 16
      %v664 = vrot.slane %v662, 4
      %v665 = vshll.u32 %v619, 16
      %v667 = vrot.slane %v665, 5
      %v668 = vor.u32 %v664, %v667
      %v669 = vrot.slane %v668, 4
      %v671 = vshll.u32 %v627, 16
      %v673 = vrot.slane %v671, 5
      %v674 = vsel %vm445, %v669, %v673
      %v676 = vshrl.u32 %v620, 16
      %v678 = vrot.slane %v676, 4
      %v679 = vshll.u32 %v620, 16
      %v681 = vrot.slane %v679, 5
      %v682 = vor.u32 %v678, %v681
      %v683 = vrot.slane %v682, 4
      %v685 = vshll.u32 %v628, 16
      %v687 = vrot.slane %v685, 5
      %v688 = vsel %vm445, %v683, %v687
      %v690 = vshrl.u32 %v621, 16
      %v692 = vrot.slane %v690, 4
      %v693 = vshll.u32 %v621, 16
      %v695 = vrot.slane %v693, 5
      %v696 = vor.u32 %v692, %v695
      %v697 = vrot.slane %v696, 4
      %v699 = vshll.u32 %v629, 16
      %v701 = vrot.slane %v699, 5
      %v702 = vsel %vm445, %v697, %v701
      %v704 = vshrl.u32 %v622, 16
      %v706 = vrot.slane %v704, 4
      %v707 = vshll.u32 %v622, 16
      %v709 = vrot.slane %v707, 5
      %v710 = vor.u32 %v706, %v709
      %v711 = vrot.slane %v710, 4
      %v713 = vshll.u32 %v630, 16
      %v715 = vrot.slane %v713, 5
      %v716 = vsel %vm445, %v711, %v715
      %v718 = vshrl.u32 %v623, 16
      %v720 = vrot.slane %v718, 4
      %v721 = vshll.u32 %v623, 16
      %v723 = vrot.slane %v721, 5
      %v724 = vor.u32 %v720, %v723
      %v725 = vrot.slane %v724, 4
      %v727 = vshll.u32 %v631, 16
      %v729 = vrot.slane %v727, 5
      %v730 = vsel %vm445, %v725, %v729
      %v732 = vshrl.u32 %v624, 16
      %v734 = vrot.slane %v732, 4
      %v735 = vshll.u32 %v624, 16
      %v737 = vrot.slane %v735, 5
      %v738 = vor.u32 %v734, %v737
      %v739 = vrot.slane %v738, 4
      %v741 = vshll.u32 %v632, 16
      %v743 = vrot.slane %v741, 5
      %v744 = vsel %vm445, %v739, %v743
      %v745 = vld [vmem:[%s372] sm:$0xe]
      %v746 = vld [vmem:[%s372 + $0x8] sm:$0xe]
      %v747 = vld [vmem:[%s372 + $0x10] sm:$0xe]
      %v748 = vld [vmem:[%s372 + $0x18] sm:$0xe]
      %v749 = vld [vmem:[%s372 + $0x20] sm:$0xe]
      %v750 = vld [vmem:[%s372 + $0x28] sm:$0xe]
      %v751 = vld [vmem:[%s372 + $0x30] sm:$0xe]
      %v752 = vld [vmem:[%s372 + $0x38] sm:$0xe]
      %v769 = vrot.slane %v745, 5
      %v770 = vrot.slane %v769, 4
      %v771 = vrot.slane %v625, 5
      %v772 = vsel %vm584, %v770, %v771
      %v773 = vrot.slane %v746, 5
      %v774 = vrot.slane %v773, 4
      %v775 = vrot.slane %v626, 5
      %v776 = vsel %vm584, %v774, %v775
      %v777 = vrot.slane %v747, 5
      %v778 = vrot.slane %v777, 4
      %v779 = vrot.slane %v627, 5
      %v780 = vsel %vm584, %v778, %v779
      %v781 = vrot.slane %v748, 5
      %v782 = vrot.slane %v781, 4
      %v783 = vrot.slane %v628, 5
      %v784 = vsel %vm584, %v782, %v783
      %v785 = vrot.slane %v749, 5
      %v786 = vrot.slane %v785, 4
      %v787 = vrot.slane %v629, 5
      %v788 = vsel %vm584, %v786, %v787
      %v789 = vrot.slane %v750, 5
      %v790 = vrot.slane %v789, 4
      %v791 = vrot.slane %v630, 5
      %v792 = vsel %vm584, %v790, %v791
      %v793 = vrot.slane %v751, 5
      %v794 = vrot.slane %v793, 4
      %v795 = vrot.slane %v631, 5
      %v796 = vsel %vm584, %v794, %v795
      %v797 = vrot.slane %v752, 5
      %v798 = vrot.slane %v797, 4
      %v799 = vrot.slane %v632, 5
      %v800 = vsel %vm584, %v798, %v799
      %s801 = scalar_lea.vmem [#allocation2], 16
      %v802 = vld [vmem:[%s801] sm:$0xf]
      %v803 = vld [vmem:[%s801 + $0x8] sm:$0xf]
      %v804 = vld [vmem:[%s801 + $0x10] sm:$0xf]
      %v805 = vld [vmem:[%s801 + $0x18] sm:$0xf]
      %v806 = vld [vmem:[%s801 + $0x20] sm:$0xf]
      %v807 = vld [vmem:[%s801 + $0x28] sm:$0xf]
      %v808 = vld [vmem:[%s801 + $0x30] sm:$0xf]
      %v809 = vld [vmem:[%s801 + $0x38] sm:$0xf]
      %v810 = vld [vmem:[%s801 + $0x4] sm:$0x1]
      %v811 = vld [vmem:[%s801 + $0xc] sm:$0x1]
      %v812 = vld [vmem:[%s801 + $0x14] sm:$0x1]
      %v813 = vld [vmem:[%s801 + $0x1c] sm:$0x1]
      %v814 = vld [vmem:[%s801 + $0x24] sm:$0x1]
      %v815 = vld [vmem:[%s801 + $0x2c] sm:$0x1]
      %v816 = vld [vmem:[%s801 + $0x34] sm:$0x1]
      %v817 = vld [vmem:[%s801 + $0x3c] sm:$0x1]
      %v819 = vshrl.u32 %v802, 16
      %v821 = vrot.slane %v819, 4
      %v822 = vshll.u32 %v802, 16
      %v824 = vrot.slane %v822, 5
      %v825 = vor.u32 %v821, %v824
      %v826 = vrot.slane %v825, 4
      %v828 = vshll.u32 %v810, 16
      %v830 = vrot.slane %v828, 5
      %v831 = vsel %vm445, %v826, %v830
      %v833 = vshrl.u32 %v803, 16
      %v835 = vrot.slane %v833, 4
      %v836 = vshll.u32 %v803, 16
      %v838 = vrot.slane %v836, 5
      %v839 = vor.u32 %v835, %v838
      %v840 = vrot.slane %v839, 4
      %v842 = vshll.u32 %v811, 16
      %v844 = vrot.slane %v842, 5
      %v845 = vsel %vm445, %v840, %v844
      %v847 = vshrl.u32 %v804, 16
      %v849 = vrot.slane %v847, 4
      %v850 = vshll.u32 %v804, 16
      %v852 = vrot.slane %v850, 5
      %v853 = vor.u32 %v849, %v852
      %v854 = vrot.slane %v853, 4
      %v856 = vshll.u32 %v812, 16
      %v858 = vrot.slane %v856, 5
      %v859 = vsel %vm445, %v854, %v858
      %v861 = vshrl.u32 %v805, 16
      %v863 = vrot.slane %v861, 4
      %v864 = vshll.u32 %v805, 16
      %v866 = vrot.slane %v864, 5
      %v867 = vor.u32 %v863, %v866
      %v868 = vrot.slane %v867, 4
      %v870 = vshll.u32 %v813, 16
      %v872 = vrot.slane %v870, 5
      %v873 = vsel %vm445, %v868, %v872
      %v875 = vshrl.u32 %v806, 16
      %v877 = vrot.slane %v875, 4
      %v878 = vshll.u32 %v806, 16
      %v880 = vrot.slane %v878, 5
      %v881 = vor.u32 %v877, %v880
      %v882 = vrot.slane %v881, 4
      %v884 = vshll.u32 %v814, 16
      %v886 = vrot.slane %v884, 5
      %v887 = vsel %vm445, %v882, %v886
      %v889 = vshrl.u32 %v807, 16
      %v891 = vrot.slane %v889, 4
      %v892 = vshll.u32 %v807, 16
      %v894 = vrot.slane %v892, 5
      %v895 = vor.u32 %v891, %v894
      %v896 = vrot.slane %v895, 4
      %v898 = vshll.u32 %v815, 16
      %v900 = vrot.slane %v898, 5
      %v901 = vsel %vm445, %v896, %v900
      %v903 = vshrl.u32 %v808, 16
      %v905 = vrot.slane %v903, 4
      %v906 = vshll.u32 %v808, 16
      %v908 = vrot.slane %v906, 5
      %v909 = vor.u32 %v905, %v908
      %v910 = vrot.slane %v909, 4
      %v912 = vshll.u32 %v816, 16
      %v914 = vrot.slane %v912, 5
      %v915 = vsel %vm445, %v910, %v914
      %v917 = vshrl.u32 %v809, 16
      %v919 = vrot.slane %v917, 4
      %v920 = vshll.u32 %v809, 16
      %v922 = vrot.slane %v920, 5
      %v923 = vor.u32 %v919, %v922
      %v924 = vrot.slane %v923, 4
      %v926 = vshll.u32 %v817, 16
      %v928 = vrot.slane %v926, 5
      %v929 = vsel %vm445, %v924, %v928
      %v930 = vld [vmem:[%s801] sm:$0xe]
      %v931 = vld [vmem:[%s801 + $0x8] sm:$0xe]
      %v932 = vld [vmem:[%s801 + $0x10] sm:$0xe]
      %v933 = vld [vmem:[%s801 + $0x18] sm:$0xe]
      %v934 = vld [vmem:[%s801 + $0x20] sm:$0xe]
      %v935 = vld [vmem:[%s801 + $0x28] sm:$0xe]
      %v936 = vld [vmem:[%s801 + $0x30] sm:$0xe]
      %v937 = vld [vmem:[%s801 + $0x38] sm:$0xe]
      %v954 = vrot.slane %v930, 5
      %v955 = vrot.slane %v954, 4
      %v956 = vrot.slane %v810, 5
      %v957 = vsel %vm584, %v955, %v956
      %v958 = vrot.slane %v931, 5
      %v959 = vrot.slane %v958, 4
      %v960 = vrot.slane %v811, 5
      %v961 = vsel %vm584, %v959, %v960
      %v962 = vrot.slane %v932, 5
      %v963 = vrot.slane %v962, 4
      %v964 = vrot.slane %v812, 5
      %v965 = vsel %vm584, %v963, %v964
      %v966 = vrot.slane %v933, 5
      %v967 = vrot.slane %v966, 4
      %v968 = vrot.slane %v813, 5
      %v969 = vsel %vm584, %v967, %v968
      %v970 = vrot.slane %v934, 5
      %v971 = vrot.slane %v970, 4
      %v972 = vrot.slane %v814, 5
      %v973 = vsel %vm584, %v971, %v972
      %v974 = vrot.slane %v935, 5
      %v975 = vrot.slane %v974, 4
      %v976 = vrot.slane %v815, 5
      %v977 = vsel %vm584, %v975, %v976
      %v978 = vrot.slane %v936, 5
      %v979 = vrot.slane %v978, 4
      %v980 = vrot.slane %v816, 5
      %v981 = vsel %vm584, %v979, %v980
      %v982 = vrot.slane %v937, 5
      %v983 = vrot.slane %v982, 4
      %v984 = vrot.slane %v817, 5
      %v985 = vsel %vm584, %v983, %v984
      %v994 = vunpack.c.l.b16 %v427
      %v995 = vunpack.c.l.b16 %v428
      %v996 = vunpack.c.l.b16 %v429
      %v997 = vunpack.c.l.b16 %v430
      %v998 = vunpack.c.l.b16 %v431
      %v999 = vunpack.c.l.b16 %v432
      %v1000 = vunpack.c.l.b16 %v433
      %v1001 = vunpack.c.l.b16 %v434
      %v1002 = vpack.c.b16 %v995, %v994
      %v1003 = vpack.c.b16 %v997, %v996
      %v1004 = vpack.c.b16 %v999, %v998
      %v1005 = vpack.c.b16 %v1001, %v1000
      %v1006 = vunpack.c.l.b16 %v459
      %v1007 = vunpack.c.l.b16 %v473
      %v1008 = vunpack.c.l.b16 %v487
      %v1009 = vunpack.c.l.b16 %v501
      %v1010 = vunpack.c.l.b16 %v515
      %v1011 = vunpack.c.l.b16 %v529
      %v1012 = vunpack.c.l.b16 %v543
      %v1013 = vunpack.c.l.b16 %v557
      %v1014 = vpack.c.b16 %v1007, %v1006
      %v1015 = vpack.c.b16 %v1009, %v1008
      %v1016 = vpack.c.b16 %v1011, %v1010
      %v1017 = vpack.c.b16 %v1013, %v1012
      %1018 = vrot.lane.b32.xlu0 %v1014, 16
      %v1019 = vpop.permute.xlu0 %1018
      %1020 = vrot.lane.b32.xlu0 %v1015, 16
      %v1021 = vpop.permute.xlu0 %1020
      %1022 = vrot.lane.b32.xlu0 %v1016, 16
      %v1023 = vpop.permute.xlu0 %1022
      %1024 = vrot.lane.b32.xlu0 %v1017, 16
      %v1025 = vpop.permute.xlu0 %1024
      %v1026 = vunpack.c.l.b16 %v588
      %v1027 = vunpack.c.l.b16 %v592
      %v1028 = vunpack.c.l.b16 %v596
      %v1029 = vunpack.c.l.b16 %v600
      %v1030 = vunpack.c.l.b16 %v604
      %v1031 = vunpack.c.l.b16 %v608
      %v1032 = vunpack.c.l.b16 %v612
      %v1033 = vunpack.c.l.b16 %v616
      %v1034 = vpack.c.b16 %v1027, %v1026
      %v1035 = vpack.c.b16 %v1029, %v1028
      %v1036 = vpack.c.b16 %v1031, %v1030
      %v1037 = vpack.c.b16 %v1033, %v1032
      %1038 = vrot.lane.b32.xlu0 %v1034, 32
      %v1039 = vpop.permute.xlu0 %1038
      %1040 = vrot.lane.b32.xlu0 %v1035, 32
      %v1041 = vpop.permute.xlu0 %1040
      %1042 = vrot.lane.b32.xlu0 %v1036, 32
      %v1043 = vpop.permute.xlu0 %1042
      %1044 = vrot.lane.b32.xlu0 %v1037, 32
      %v1045 = vpop.permute.xlu0 %1044
      %v1054 = vunpack.c.l.b16 %v617
      %v1055 = vunpack.c.l.b16 %v618
      %v1056 = vunpack.c.l.b16 %v619
      %v1057 = vunpack.c.l.b16 %v620
      %v1058 = vunpack.c.l.b16 %v621
      %v1059 = vunpack.c.l.b16 %v622
      %v1060 = vunpack.c.l.b16 %v623
      %v1061 = vunpack.c.l.b16 %v624
      %v1062 = vpack.c.b16 %v1055, %v1054
      %v1063 = vpack.c.b16 %v1057, %v1056
      %v1064 = vpack.c.b16 %v1059, %v1058
      %v1065 = vpack.c.b16 %v1061, %v1060
      %1066 = vrot.lane.b32.xlu0 %v1062, 48
      %v1067 = vpop.permute.xlu0 %1066
      %1068 = vrot.lane.b32.xlu0 %v1063, 48
      %v1069 = vpop.permute.xlu0 %1068
      %1070 = vrot.lane.b32.xlu0 %v1064, 48
      %v1071 = vpop.permute.xlu0 %1070
      %1072 = vrot.lane.b32.xlu0 %v1065, 48
      %v1073 = vpop.permute.xlu0 %1072
      %v1074 = vunpack.c.l.b16 %v646
      %v1075 = vunpack.c.l.b16 %v660
      %v1076 = vunpack.c.l.b16 %v674
      %v1077 = vunpack.c.l.b16 %v688
      %v1078 = vunpack.c.l.b16 %v702
      %v1079 = vunpack.c.l.b16 %v716
      %v1080 = vunpack.c.l.b16 %v730
      %v1081 = vunpack.c.l.b16 %v744
      %v1082 = vpack.c.b16 %v1075, %v1074
      %v1083 = vpack.c.b16 %v1077, %v1076
      %v1084 = vpack.c.b16 %v1079, %v1078
      %v1085 = vpack.c.b16 %v1081, %v1080
      %1086 = vrot.lane.b32.xlu0 %v1082, 64
      %v1087 = vpop.permute.xlu0 %1086
      %1088 = vrot.lane.b32.xlu0 %v1083, 64
      %v1089 = vpop.permute.xlu0 %1088
      %1090 = vrot.lane.b32.xlu0 %v1084, 64
      %v1091 = vpop.permute.xlu0 %1090
      %1092 = vrot.lane.b32.xlu0 %v1085, 64
      %v1093 = vpop.permute.xlu0 %1092
      %v1094 = vunpack.c.l.b16 %v772
      %v1095 = vunpack.c.l.b16 %v776
      %v1096 = vunpack.c.l.b16 %v780
      %v1097 = vunpack.c.l.b16 %v784
      %v1098 = vunpack.c.l.b16 %v788
      %v1099 = vunpack.c.l.b16 %v792
      %v1100 = vunpack.c.l.b16 %v796
      %v1101 = vunpack.c.l.b16 %v800
      %v1102 = vpack.c.b16 %v1095, %v1094
      %v1103 = vpack.c.b16 %v1097, %v1096
      %v1104 = vpack.c.b16 %v1099, %v1098
      %v1105 = vpack.c.b16 %v1101, %v1100
      %1106 = vrot.lane.b32.xlu0 %v1102, 80
      %v1107 = vpop.permute.xlu0 %1106
      %1108 = vrot.lane.b32.xlu0 %v1103, 80
      %v1109 = vpop.permute.xlu0 %1108
      %1110 = vrot.lane.b32.xlu0 %v1104, 80
      %v1111 = vpop.permute.xlu0 %1110
      %1112 = vrot.lane.b32.xlu0 %v1105, 80
      %v1113 = vpop.permute.xlu0 %1112
      %v1122 = vunpack.c.l.b16 %v802
      %v1123 = vunpack.c.l.b16 %v803
      %v1124 = vunpack.c.l.b16 %v804
      %v1125 = vunpack.c.l.b16 %v805
      %v1126 = vunpack.c.l.b16 %v806
      %v1127 = vunpack.c.l.b16 %v807
      %v1128 = vunpack.c.l.b16 %v808
      %v1129 = vunpack.c.l.b16 %v809
      %v1130 = vpack.c.b16 %v1123, %v1122
      %v1131 = vpack.c.b16 %v1125, %v1124
      %v1132 = vpack.c.b16 %v1127, %v1126
      %v1133 = vpack.c.b16 %v1129, %v1128
      %1134 = vrot.lane.b32.xlu0 %v1130, 96
      %v1135 = vpop.permute.xlu0 %1134
      %1136 = vrot.lane.b32.xlu0 %v1131, 96
      %v1137 = vpop.permute.xlu0 %1136
      %1138 = vrot.lane.b32.xlu0 %v1132, 96
      %v1139 = vpop.permute.xlu0 %1138
      %1140 = vrot.lane.b32.xlu0 %v1133, 96
      %v1141 = vpop.permute.xlu0 %1140
      %v1142 = vunpack.c.l.b16 %v831
      %v1143 = vunpack.c.l.b16 %v845
      %v1144 = vunpack.c.l.b16 %v859
      %v1145 = vunpack.c.l.b16 %v873
      %v1146 = vunpack.c.l.b16 %v887
      %v1147 = vunpack.c.l.b16 %v901
      %v1148 = vunpack.c.l.b16 %v915
      %v1149 = vunpack.c.l.b16 %v929
      %v1150 = vpack.c.b16 %v1143, %v1142
      %v1151 = vpack.c.b16 %v1145, %v1144
      %v1152 = vpack.c.b16 %v1147, %v1146
      %v1153 = vpack.c.b16 %v1149, %v1148
      %1154 = vrot.lane.b32.xlu0 %v1150, 112
      %v1155 = vpop.permute.xlu0 %1154
      %1156 = vrot.lane.b32.xlu0 %v1151, 112
      %v1157 = vpop.permute.xlu0 %1156
      %1158 = vrot.lane.b32.xlu0 %v1152, 112
      %v1159 = vpop.permute.xlu0 %1158
      %1160 = vrot.lane.b32.xlu0 %v1153, 112
      %v1161 = vpop.permute.xlu0 %1160
      %v1162 = vunpack.c.l.b16 %v957
      %v1163 = vunpack.c.l.b16 %v961
      %v1164 = vunpack.c.l.b16 %v965
      %v1165 = vunpack.c.l.b16 %v969
      %v1166 = vunpack.c.l.b16 %v973
      %v1167 = vunpack.c.l.b16 %v977
      %v1168 = vunpack.c.l.b16 %v981
      %v1169 = vunpack.c.l.b16 %v985
      %v1170 = vpack.c.b16 %v1163, %v1162
      %v1171 = vpack.c.b16 %v1165, %v1164
      %v1172 = vpack.c.b16 %v1167, %v1166
      %v1173 = vpack.c.b16 %v1169, %v1168
      %vm1174 = vcmask 130048
      %v1177 = vsel %vm1174, %v1002, %v1019
      %v1180 = vsel %vm1174, %v1003, %v1021
      %v1183 = vsel %vm1174, %v1004, %v1023
      %v1186 = vsel %vm1174, %v1005, %v1025
      %vm1187 = vcmask 261120
      %v1189 = vsel %vm1187, %v1177, %v1039
      %v1191 = vsel %vm1187, %v1180, %v1041
      %v1193 = vsel %vm1187, %v1183, %v1043
      %v1195 = vsel %vm1187, %v1186, %v1045
      %vm1196 = vcmask 392192
      %v1198 = vsel %vm1196, %v1189, %v1067
      %v1200 = vsel %vm1196, %v1191, %v1069
      %v1202 = vsel %vm1196, %v1193, %v1071
      %v1204 = vsel %vm1196, %v1195, %v1073
      %vm1205 = vcmask 523264
      %v1207 = vsel %vm1205, %v1198, %v1087
      %v1209 = vsel %vm1205, %v1200, %v1089
      %v1211 = vsel %vm1205, %v1202, %v1091
      %v1213 = vsel %vm1205, %v1204, %v1093
      %vm1214 = vcmask 654336
      %v1216 = vsel %vm1214, %v1207, %v1107
      %v1218 = vsel %vm1214, %v1209, %v1109
      %v1220 = vsel %vm1214, %v1211, %v1111
      %v1222 = vsel %vm1214, %v1213, %v1113
      %vm1223 = vcmask 785408
      %v1225 = vsel %vm1223, %v1216, %v1135
      %v1227 = vsel %vm1223, %v1218, %v1137
      %v1229 = vsel %vm1223, %v1220, %v1139
      %v1231 = vsel %vm1223, %v1222, %v1141
      %vm1232 = vcmask 916480
      %v1234 = vsel %vm1232, %v1225, %v1155
      %v1237 = vsel %vm1232, %v1227, %v1157
      %v1240 = vsel %vm1232, %v1229, %v1159
      %v1243 = vsel %vm1232, %v1231, %v1161
      %v1245 = vld [vmem:[%s1] sm:$0xf]
      %v1246 = vld [vmem:[%s1 + $0x4] sm:$0xf]
      %v1247 = vld [vmem:[%s1 + $0x8] sm:$0xf]
      %v1248 = vld [vmem:[%s1 + $0xc] sm:$0xf]
      %v1249 = vld [vmem:[%s1 + $0x10] sm:$0xf]
      %v1250 = vld [vmem:[%s1 + $0x14] sm:$0xf]
      %v1251 = vld [vmem:[%s1 + $0x18] sm:$0xf]
      %v1252 = vld [vmem:[%s1 + $0x1c] sm:$0xf]
      %v1253 = vld [vmem:[%s1 + $0x20] sm:$0xf]
      %v1254 = vld [vmem:[%s1 + $0x24] sm:$0xf]
      %v1255 = vld [vmem:[%s1 + $0x28] sm:$0xf]
      %v1256 = vld [vmem:[%s1 + $0x2c] sm:$0xf]
      %v1257 = vld [vmem:[%s1 + $0x30] sm:$0xf]
      %v1258 = vld [vmem:[%s1 + $0x34] sm:$0xf]
      %v1259 = vld [vmem:[%s1 + $0x38] sm:$0xf]
      %v1260 = vld [vmem:[%s1 + $0x3c] sm:$0xf]
      %v1261 = vld [vmem:[%s1 + $0x40] sm:$0xf]
      %v1262 = vld [vmem:[%s1 + $0x44] sm:$0xf]
      %v1263 = vld [vmem:[%s2] sm:$0x1]
      %v1265 = vlaneseq
      %v1266 = vshrl.u32 %v1265, 7
      %v1267 = vsub.s32 0, %v1266
      %v1268 = vrot.slane %v1263, %v1267
      %v1288 = vunpack.c.l.b16 %v1245
      %v1289 = vunpack.c.l.b16 %v1246
      %v1290 = vunpack.c.l.b16 %v1247
      %v1291 = vunpack.c.l.b16 %v1248
      %v1292 = vunpack.c.l.b16 %v1249
      %v1293 = vunpack.c.l.b16 %v1250
      %v1294 = vunpack.c.l.b16 %v1251
      %v1295 = vunpack.c.l.b16 %v1252
      %v1296 = vunpack.c.l.b16 %v1253
      %v1297 = vunpack.c.l.b16 %v1254
      %v1298 = vunpack.c.l.b16 %v1255
      %v1299 = vunpack.c.l.b16 %v1256
      %v1300 = vunpack.c.l.b16 %v1257
      %v1301 = vunpack.c.l.b16 %v1258
      %v1302 = vunpack.c.l.b16 %v1259
      %v1303 = vunpack.c.l.b16 %v1260
      %v1304 = vunpack.c.l.b16 %v1261
      %v1305 = vunpack.c.l.b16 %v1262
      %v1306 = vpack.c.b16 %v1289, %v1288
      %v1307 = vpack.c.b16 %v1291, %v1290
      %v1308 = vpack.c.b16 %v1293, %v1292
      %v1309 = vpack.c.b16 %v1295, %v1294
      %v1310 = vpack.c.b16 %v1297, %v1296
      %v1311 = vpack.c.b16 %v1299, %v1298
      %v1312 = vpack.c.b16 %v1301, %v1300
      %v1313 = vpack.c.b16 %v1303, %v1302
      %v1314 = vpack.c.b16 %v1305, %v1304
      %v1325 = vsel %vm1174, %v1170, 0
      %v1328 = vsel %vm1174, %v1171, 0
      %v1331 = vsel %vm1174, %v1172, 0
      %v1334 = vsel %vm1174, %v1173, 0
      %1336 = vmatprep.subr.bf16.mxu0 0
      %1337 = vmatpush1.bf16.msra.mxu0 %v1306
      %1338 = vmatprep.subr.bf16.mxu0 0
      %1339 = vmatpush1.bf16.msra.mxu0 %v1307
      %1340 = vmatprep.subr.bf16.mxu0 0
      %1341 = vmatpush1.bf16.msra.mxu0 %v1308
      %1342 = vmatprep.subr.bf16.mxu0 0
      %1343 = vmatpush1.bf16.msra.mxu0 %v1309
      %1344 = vmatprep.subr.bf16.mxu0 0
      %1345 = vmatpush1.bf16.msra.mxu0 %v1310
      %1346 = vmatprep.subr.bf16.mxu0 0
      %1347 = vmatpush1.bf16.msra.mxu0 %v1311
      %1348 = vmatprep.subr.bf16.mxu0 0
      %1349 = vmatpush1.bf16.msra.mxu0 %v1312
      %1350 = vmatprep.subr.bf16.mxu0 0
      %1351 = vmatpush1.bf16.msra.mxu0 %v1313
      %1352 = vmatprep.subr.bf16.mxu0 0
      %1353 = vmatpush1.bf16.msra.mxu0 %v1314
      %1354 = vmatprep.subr.bf16.mxu0 0
      %1355 = vmatpush1.bf16.msra.mxu0 0
      %1356 = vmatprep.subr.bf16.mxu0 0
      %1357 = vmatpush1.bf16.msra.mxu0 0
      %1358 = vmatprep.subr.bf16.mxu0 0
      %1359 = vmatpush1.bf16.msra.mxu0 0
      %1360 = vmatprep.subr.bf16.mxu0 0
      %1361 = vmatpush1.bf16.msra.mxu0 0
      %1362 = vmatprep.subr.bf16.mxu0 0
      %1363 = vmatpush1.bf16.msra.mxu0 0
      %1364 = vmatprep.subr.bf16.mxu0 0
      %1365 = vmatpush1.bf16.msra.mxu0 0
      %1366 = vmatprep.subr.bf16.mxu0 0
      %1367 = vmatpush1.bf16.msra.mxu0 0
      %1368 = vmatprep.mubr.bf16.mxu0 %v1325
      %1369 = vmatmul.mubr.bf16.gmra.mrb[0].mxu0 %v1234
      %v1370 = vpop.f32.mrb[0].mxu0
      %v1371 = vadd.f32 %v1268, %v1370
      %v1372 = vpop.f32.mrb[0].mxu0
      %v1373 = vpop.f32.mrb[0].mxu0
      %v1374 = vadd.f32 %v1268, %v1373
      %v1375 = vpop.f32.mrb[0].mxu0
      %1376 = vmatprep.mubr.bf16.mxu0 %v1328
      %1377 = vmatmul.mubr.bf16.gmra.mrb[0].mxu0 %v1237
      %v1378 = vpop.f32.mrb[0].mxu0
      %v1379 = vadd.f32 %v1268, %v1378
      %v1380 = vpop.f32.mrb[0].mxu0
      %v1381 = vpop.f32.mrb[0].mxu0
      %v1382 = vadd.f32 %v1268, %v1381
      %v1383 = vpop.f32.mrb[0].mxu0
      %1384 = vmatprep.mubr.bf16.mxu0 %v1331
      %1385 = vmatmul.mubr.bf16.gmra.mrb[0].mxu0 %v1240
      %v1386 = vpop.f32.mrb[0].mxu0
      %v1387 = vadd.f32 %v1268, %v1386
      %v1388 = vpop.f32.mrb[0].mxu0
      %v1389 = vpop.f32.mrb[0].mxu0
      %v1390 = vadd.f32 %v1268, %v1389
      %v1391 = vpop.f32.mrb[0].mxu0
      %1392 = vmatprep.mubr.bf16.mxu0 %v1334
      %1393 = vmatmul.mubr.bf16.gmra.mrb[0].mxu0 %v1243
      %v1394 = vpop.f32.mrb[0].mxu0
      %v1395 = vadd.f32 %v1268, %v1394
      %v1396 = vpop.f32.mrb[0].mxu0
      %v1397 = vpop.f32.mrb[0].mxu0
      %v1398 = vadd.f32 %v1268, %v1397
      %v1399 = vpop.f32.mrb[0].mxu0
      %1400 = vdwg.mxu0
      %v1401 = vmax.f32 %v1371, 0.0
      %v1402 = vmax.f32 %v1374, 0.0
      %v1403 = vmax.f32 %v1379, 0.0
      %v1404 = vmax.f32 %v1382, 0.0
      %v1405 = vmax.f32 %v1387, 0.0
      %v1406 = vmax.f32 %v1390, 0.0
      %v1407 = vmax.f32 %v1395, 0.0
      %v1408 = vmax.f32 %v1398, 0.0
      %vm1409 = vcmask 60416
      %1410 = vst.msk [vmem:[#allocation3] sm:$0xf] %vm1409, 0
      %vm1411 = vcmask 57344
      %1412 = vst.msk [vmem:[#allocation3 + $0x4] sm:$0x1] %vm1411, 0
      %1413 = vst.msk [vmem:[#allocation3 + $0x8] sm:$0xf] %vm1409, 0
      %1414 = vst.msk [vmem:[#allocation3 + $0xc] sm:$0x1] %vm1411, 0
      %1415 = vst.msk [vmem:[#allocation3 + $0x10] sm:$0xf] %vm1409, 0
      %1416 = vst.msk [vmem:[#allocation3 + $0x14] sm:$0x1] %vm1411, 0
      %1417 = vst.msk [vmem:[#allocation3 + $0x18] sm:$0xf] %vm1409, 0
      %1418 = vst.msk [vmem:[#allocation3 + $0x1c] sm:$0x1] %vm1411, 0
      %1419 = vst.msk [vmem:[#allocation3 + $0x20] sm:$0xf] %vm1409, 0
      %1420 = vst.msk [vmem:[#allocation3 + $0x24] sm:$0x1] %vm1411, 0
      %1421 = vst.msk [vmem:[#allocation3 + $0x28] sm:$0xf] %vm1409, 0
      %1422 = vst.msk [vmem:[#allocation3 + $0x2c] sm:$0x1] %vm1411, 0
      %1423 = vst.msk [vmem:[#allocation3 + $0x30] sm:$0xf] %vm1409, 0
      %1424 = vst.msk [vmem:[#allocation3 + $0x34] sm:$0x1] %vm1411, 0
      %1425 = vst.msk [vmem:[#allocation3 + $0x38] sm:$0xf] %vm1409, 0
      %1426 = vst.msk [vmem:[#allocation3 + $0x3c] sm:$0x1] %vm1411, 0
      %1427 = vst.msk [vmem:[#allocation3 + $0x40] sm:$0xf] %vm1409, 0
      %1428 = vst.msk [vmem:[#allocation3 + $0x44] sm:$0x1] %vm1411, 0
      %1429 = vst.msk [vmem:[#allocation3 + $0x48] sm:$0xf] %vm1409, 0
      %1430 = vst.msk [vmem:[#allocation3 + $0x4c] sm:$0x1] %vm1411, 0
      %v1431 = vpack.c.bf16 %v1402, %v1401
      %v1432 = vpack.c.bf16 %v1404, %v1403
      %v1433 = vpack.c.bf16 %v1406, %v1405
      %v1434 = vpack.c.bf16 %v1408, %v1407
      %v1439 = vunpack.c.l.b16 %v1431
      %v1440 = vunpack.c.h.b16 %v1431
      %v1441 = vunpack.c.l.b16 %v1432
      %v1442 = vunpack.c.h.b16 %v1432
      %v1443 = vunpack.c.l.b16 %v1433
      %v1444 = vunpack.c.h.b16 %v1433
      %v1445 = vunpack.c.l.b16 %v1434
      %v1446 = vunpack.c.h.b16 %v1434
      %v1447 = vpack.c.b16 %v1439, %v1439
      %v1448 = vpack.c.b16 %v1440, %v1440
      %v1449 = vpack.c.b16 %v1441, %v1441
      %v1450 = vpack.c.b16 %v1442, %v1442
      %v1451 = vpack.c.b16 %v1443, %v1443
      %v1452 = vpack.c.b16 %v1444, %v1444
      %v1453 = vpack.c.b16 %v1445, %v1445
      %v1454 = vpack.c.b16 %v1446, %v1446
      %v1456 = vshrl.u32 %v1447, 16
      %v1458 = vrot.slane %v1456, 7
      %v1459 = vshll.u32 %v1447, 16
      %v1461 = vor.u32 %v1458, %v1459
      %v1462 = vrot.slane %v1458, 4
      %v1464 = vshrl.u32 %v1448, 16
      %v1466 = vrot.slane %v1464, 7
      %v1467 = vshll.u32 %v1448, 16
      %v1469 = vor.u32 %v1466, %v1467
      %v1470 = vrot.slane %v1466, 4
      %v1472 = vshrl.u32 %v1449, 16
      %v1474 = vrot.slane %v1472, 7
      %v1475 = vshll.u32 %v1449, 16
      %v1477 = vor.u32 %v1474, %v1475
      %v1478 = vrot.slane %v1474, 4
      %v1480 = vshrl.u32 %v1450, 16
      %v1482 = vrot.slane %v1480, 7
      %v1483 = vshll.u32 %v1450, 16
      %v1485 = vor.u32 %v1482, %v1483
      %v1486 = vrot.slane %v1482, 4
      %v1488 = vshrl.u32 %v1451, 16
      %v1490 = vrot.slane %v1488, 7
      %v1491 = vshll.u32 %v1451, 16
      %v1493 = vor.u32 %v1490, %v1491
      %v1494 = vrot.slane %v1490, 4
      %v1496 = vshrl.u32 %v1452, 16
      %v1498 = vrot.slane %v1496, 7
      %v1499 = vshll.u32 %v1452, 16
      %v1501 = vor.u32 %v1498, %v1499
      %v1502 = vrot.slane %v1498, 4
      %v1504 = vshrl.u32 %v1453, 16
      %v1506 = vrot.slane %v1504, 7
      %v1507 = vshll.u32 %v1453, 16
      %v1509 = vor.u32 %v1506, %v1507
      %v1510 = vrot.slane %v1506, 4
      %v1512 = vshrl.u32 %v1454, 16
      %v1514 = vrot.slane %v1512, 7
      %v1515 = vshll.u32 %v1454, 16
      %v1517 = vor.u32 %v1514, %v1515
      %v1518 = vrot.slane %v1514, 4
      %s1535 = scalar_lea.vmem [#allocation3], 8
      %vm1536 = vcmask 60416
      %vm1537 = vmand %vm1536, %vm374
      %v1538 = vld [vmem:[%s1535] sm:$0xf]
      %v1539 = vsel %vm1537, %v1461, %v1538
      %1540 = vst [vmem:[%s1535] sm:$0xf] %v1539
      %vm1541 = vcmask 57344
      %vm1542 = vmand %vm1541, %vm380
      %v1543 = vld [vmem:[%s1535 + $0x4] sm:$0x1]
      %v1544 = vsel %vm1542, %v1462, %v1543
      %1545 = vst [vmem:[%s1535 + $0x4] sm:$0x1] %v1544
      %v1546 = vld [vmem:[%s1535 + $0x8] sm:$0xf]
      %v1547 = vsel %vm1537, %v1469, %v1546
      %1548 = vst [vmem:[%s1535 + $0x8] sm:$0xf] %v1547
      %v1549 = vld [vmem:[%s1535 + $0xc] sm:$0x1]
      %v1550 = vsel %vm1542, %v1470, %v1549
      %1551 = vst [vmem:[%s1535 + $0xc] sm:$0x1] %v1550
      %v1552 = vld [vmem:[%s1535 + $0x10] sm:$0xf]
      %v1553 = vsel %vm1537, %v1477, %v1552
      %1554 = vst [vmem:[%s1535 + $0x10] sm:$0xf] %v1553
      %v1555 = vld [vmem:[%s1535 + $0x14] sm:$0x1]
      %v1556 = vsel %vm1542, %v1478, %v1555
      %1557 = vst [vmem:[%s1535 + $0x14] sm:$0x1] %v1556
      %v1558 = vld [vmem:[%s1535 + $0x18] sm:$0xf]
      %v1559 = vsel %vm1537, %v1485, %v1558
      %1560 = vst [vmem:[%s1535 + $0x18] sm:$0xf] %v1559
      %v1561 = vld [vmem:[%s1535 + $0x1c] sm:$0x1]
      %v1562 = vsel %vm1542, %v1486, %v1561
      %1563 = vst [vmem:[%s1535 + $0x1c] sm:$0x1] %v1562
      %v1564 = vld [vmem:[%s1535 + $0x20] sm:$0xf]
      %v1565 = vsel %vm1537, %v1493, %v1564
      %1566 = vst [vmem:[%s1535 + $0x20] sm:$0xf] %v1565
      %v1567 = vld [vmem:[%s1535 + $0x24] sm:$0x1]
      %v1568 = vsel %vm1542, %v1494, %v1567
      %1569 = vst [vmem:[%s1535 + $0x24] sm:$0x1] %v1568
      %v1570 = vld [vmem:[%s1535 + $0x28] sm:$0xf]
      %v1571 = vsel %vm1537, %v1501, %v1570
      %1572 = vst [vmem:[%s1535 + $0x28] sm:$0xf] %v1571
      %v1573 = vld [vmem:[%s1535 + $0x2c] sm:$0x1]
      %v1574 = vsel %vm1542, %v1502, %v1573
      %1575 = vst [vmem:[%s1535 + $0x2c] sm:$0x1] %v1574
      %v1576 = vld [vmem:[%s1535 + $0x30] sm:$0xf]
      %v1577 = vsel %vm1537, %v1509, %v1576
      %1578 = vst [vmem:[%s1535 + $0x30] sm:$0xf] %v1577
      %v1579 = vld [vmem:[%s1535 + $0x34] sm:$0x1]
      %v1580 = vsel %vm1542, %v1510, %v1579
      %1581 = vst [vmem:[%s1535 + $0x34] sm:$0x1] %v1580
      %v1582 = vld [vmem:[%s1535 + $0x38] sm:$0xf]
      %v1583 = vsel %vm1537, %v1517, %v1582
      %1584 = vst [vmem:[%s1535 + $0x38] sm:$0xf] %v1583
      %v1585 = vld [vmem:[%s1535 + $0x3c] sm:$0x1]
      %v1586 = vsel %vm1542, %v1518, %v1585
      %1587 = vst [vmem:[%s1535 + $0x3c] sm:$0x1] %v1586
      %v1588 = vld [vmem:[#allocation3] sm:$0xf]
      %v1589 = vld [vmem:[#allocation3 + $0x8] sm:$0xf]
      %v1590 = vld [vmem:[#allocation3 + $0x10] sm:$0xf]
      %v1591 = vld [vmem:[#allocation3 + $0x18] sm:$0xf]
      %v1592 = vld [vmem:[#allocation3 + $0x20] sm:$0xf]
      %v1593 = vld [vmem:[#allocation3 + $0x28] sm:$0xf]
      %v1594 = vld [vmem:[#allocation3 + $0x30] sm:$0xf]
      %v1595 = vld [vmem:[#allocation3 + $0x38] sm:$0xf]
      %v1596 = vld [vmem:[#allocation3 + $0x4] sm:$0x1]
      %v1597 = vld [vmem:[#allocation3 + $0xc] sm:$0x1]
      %v1598 = vld [vmem:[#allocation3 + $0x14] sm:$0x1]
      %v1599 = vld [vmem:[#allocation3 + $0x1c] sm:$0x1]
      %v1600 = vld [vmem:[#allocation3 + $0x24] sm:$0x1]
      %v1601 = vld [vmem:[#allocation3 + $0x2c] sm:$0x1]
      %v1602 = vld [vmem:[#allocation3 + $0x34] sm:$0x1]
      %v1603 = vld [vmem:[#allocation3 + $0x3c] sm:$0x1]
      %v1605 = vshrl.u32 %v1588, 16
      %v1607 = vrot.slane %v1605, 4
      %v1608 = vshll.u32 %v1588, 16
      %v1610 = vrot.slane %v1608, 5
      %v1611 = vor.u32 %v1607, %v1610
      %v1612 = vrot.slane %v1611, 4
      %v1614 = vshll.u32 %v1596, 16
      %v1616 = vrot.slane %v1614, 5
      %v1617 = vsel %vm445, %v1612, %v1616
      %v1619 = vshrl.u32 %v1589, 16
      %v1621 = vrot.slane %v1619, 4
      %v1622 = vshll.u32 %v1589, 16
      %v1624 = vrot.slane %v1622, 5
      %v1625 = vor.u32 %v1621, %v1624
      %v1626 = vrot.slane %v1625, 4
      %v1628 = vshll.u32 %v1597, 16
      %v1630 = vrot.slane %v1628, 5
      %v1631 = vsel %vm445, %v1626, %v1630
      %v1633 = vshrl.u32 %v1590, 16
      %v1635 = vrot.slane %v1633, 4
      %v1636 = vshll.u32 %v1590, 16
      %v1638 = vrot.slane %v1636, 5
      %v1639 = vor.u32 %v1635, %v1638
      %v1640 = vrot.slane %v1639, 4
      %v1642 = vshll.u32 %v1598, 16
      %v1644 = vrot.slane %v1642, 5
      %v1645 = vsel %vm445, %v1640, %v1644
      %v1647 = vshrl.u32 %v1591, 16
      %v1649 = vrot.slane %v1647, 4
      %v1650 = vshll.u32 %v1591, 16
      %v1652 = vrot.slane %v1650, 5
      %v1653 = vor.u32 %v1649, %v1652
      %v1654 = vrot.slane %v1653, 4
      %v1656 = vshll.u32 %v1599, 16
      %v1658 = vrot.slane %v1656, 5
      %v1659 = vsel %vm445, %v1654, %v1658
      %v1661 = vshrl.u32 %v1592, 16
      %v1663 = vrot.slane %v1661, 4
      %v1664 = vshll.u32 %v1592, 16
      %v1666 = vrot.slane %v1664, 5
      %v1667 = vor.u32 %v1663, %v1666
      %v1668 = vrot.slane %v1667, 4
      %v1670 = vshll.u32 %v1600, 16
      %v1672 = vrot.slane %v1670, 5
      %v1673 = vsel %vm445, %v1668, %v1672
      %v1675 = vshrl.u32 %v1593, 16
      %v1677 = vrot.slane %v1675, 4
      %v1678 = vshll.u32 %v1593, 16
      %v1680 = vrot.slane %v1678, 5
      %v1681 = vor.u32 %v1677, %v1680
      %v1682 = vrot.slane %v1681, 4
      %v1684 = vshll.u32 %v1601, 16
      %v1686 = vrot.slane %v1684, 5
      %v1687 = vsel %vm445, %v1682, %v1686
      %v1689 = vshrl.u32 %v1594, 16
      %v1691 = vrot.slane %v1689, 4
      %v1692 = vshll.u32 %v1594, 16
      %v1694 = vrot.slane %v1692, 5
      %v1695 = vor.u32 %v1691, %v1694
      %v1696 = vrot.slane %v1695, 4
      %v1698 = vshll.u32 %v1602, 16
      %v1700 = vrot.slane %v1698, 5
      %v1701 = vsel %vm445, %v1696, %v1700
      %v1703 = vshrl.u32 %v1595, 16
      %v1705 = vrot.slane %v1703, 4
      %v1706 = vshll.u32 %v1595, 16
      %v1708 = vrot.slane %v1706, 5
      %v1709 = vor.u32 %v1705, %v1708
      %v1710 = vrot.slane %v1709, 4
      %v1712 = vshll.u32 %v1603, 16
      %v1714 = vrot.slane %v1712, 5
      %v1715 = vsel %vm445, %v1710, %v1714
      %v1716 = vld [vmem:[#allocation3] sm:$0xe]
      %v1717 = vld [vmem:[#allocation3 + $0x8] sm:$0xe]
      %v1718 = vld [vmem:[#allocation3 + $0x10] sm:$0xe]
      %v1719 = vld [vmem:[#allocation3 + $0x18] sm:$0xe]
      %v1720 = vld [vmem:[#allocation3 + $0x20] sm:$0xe]
      %v1721 = vld [vmem:[#allocation3 + $0x28] sm:$0xe]
      %v1722 = vld [vmem:[#allocation3 + $0x30] sm:$0xe]
      %v1723 = vld [vmem:[#allocation3 + $0x38] sm:$0xe]
      %v1740 = vrot.slane %v1716, 5
      %v1741 = vrot.slane %v1740, 4
      %v1742 = vrot.slane %v1596, 5
      %v1743 = vsel %vm584, %v1741, %v1742
      %v1744 = vrot.slane %v1717, 5
      %v1745 = vrot.slane %v1744, 4
      %v1746 = vrot.slane %v1597, 5
      %v1747 = vsel %vm584, %v1745, %v1746
      %v1748 = vrot.slane %v1718, 5
      %v1749 = vrot.slane %v1748, 4
      %v1750 = vrot.slane %v1598, 5
      %v1751 = vsel %vm584, %v1749, %v1750
      %v1752 = vrot.slane %v1719, 5
      %v1753 = vrot.slane %v1752, 4
      %v1754 = vrot.slane %v1599, 5
      %v1755 = vsel %vm584, %v1753, %v1754
      %v1756 = vrot.slane %v1720, 5
      %v1757 = vrot.slane %v1756, 4
      %v1758 = vrot.slane %v1600, 5
      %v1759 = vsel %vm584, %v1757, %v1758
      %v1760 = vrot.slane %v1721, 5
      %v1761 = vrot.slane %v1760, 4
      %v1762 = vrot.slane %v1601, 5
      %v1763 = vsel %vm584, %v1761, %v1762
      %v1764 = vrot.slane %v1722, 5
      %v1765 = vrot.slane %v1764, 4
      %v1766 = vrot.slane %v1602, 5
      %v1767 = vsel %vm584, %v1765, %v1766
      %v1768 = vrot.slane %v1723, 5
      %v1769 = vrot.slane %v1768, 4
      %v1770 = vrot.slane %v1603, 5
      %v1771 = vsel %vm584, %v1769, %v1770
      %v1772 = vld [vmem:[%s1535] sm:$0xf]
      %v1773 = vld [vmem:[%s1535 + $0x8] sm:$0xf]
      %v1774 = vld [vmem:[%s1535 + $0x10] sm:$0xf]
      %v1775 = vld [vmem:[%s1535 + $0x18] sm:$0xf]
      %v1776 = vld [vmem:[%s1535 + $0x20] sm:$0xf]
      %v1777 = vld [vmem:[%s1535 + $0x28] sm:$0xf]
      %v1778 = vld [vmem:[%s1535 + $0x30] sm:$0xf]
      %v1779 = vld [vmem:[%s1535 + $0x38] sm:$0xf]
      %v1780 = vld [vmem:[%s1535 + $0x4] sm:$0x1]
      %v1781 = vld [vmem:[%s1535 + $0xc] sm:$0x1]
      %v1782 = vld [vmem:[%s1535 + $0x14] sm:$0x1]
      %v1783 = vld [vmem:[%s1535 + $0x1c] sm:$0x1]
      %v1784 = vld [vmem:[%s1535 + $0x24] sm:$0x1]
      %v1785 = vld [vmem:[%s1535 + $0x2c] sm:$0x1]
      %v1786 = vld [vmem:[%s1535 + $0x34] sm:$0x1]
      %v1787 = vld [vmem:[%s1535 + $0x3c] sm:$0x1]
      %v1789 = vshrl.u32 %v1772, 16
      %v1791 = vrot.slane %v1789, 4
      %v1792 = vshll.u32 %v1772, 16
      %v1794 = vrot.slane %v1792, 5
      %v1795 = vor.u32 %v1791, %v1794
      %v1796 = vrot.slane %v1795, 4
      %v1798 = vshll.u32 %v1780, 16
      %v1800 = vrot.slane %v1798, 5
      %v1801 = vsel %vm445, %v1796, %v1800
      %v1803 = vshrl.u32 %v1773, 16
      %v1805 = vrot.slane %v1803, 4
      %v1806 = vshll.u32 %v1773, 16
      %v1808 = vrot.slane %v1806, 5
      %v1809 = vor.u32 %v1805, %v1808
      %v1810 = vrot.slane %v1809, 4
      %v1812 = vshll.u32 %v1781, 16
      %v1814 = vrot.slane %v1812, 5
      %v1815 = vsel %vm445, %v1810, %v1814
      %v1817 = vshrl.u32 %v1774, 16
      %v1819 = vrot.slane %v1817, 4
      %v1820 = vshll.u32 %v1774, 16
      %v1822 = vrot.slane %v1820, 5
      %v1823 = vor.u32 %v1819, %v1822
      %v1824 = vrot.slane %v1823, 4
      %v1826 = vshll.u32 %v1782, 16
      %v1828 = vrot.slane %v1826, 5
      %v1829 = vsel %vm445, %v1824, %v1828
      %v1831 = vshrl.u32 %v1775, 16
      %v1833 = vrot.slane %v1831, 4
      %v1834 = vshll.u32 %v1775, 16
      %v1836 = vrot.slane %v1834, 5
      %v1837 = vor.u32 %v1833, %v1836
      %v1838 = vrot.slane %v1837, 4
      %v1840 = vshll.u32 %v1783, 16
      %v1842 = vrot.slane %v1840, 5
      %v1843 = vsel %vm445, %v1838, %v1842
      %v1845 = vshrl.u32 %v1776, 16
      %v1847 = vrot.slane %v1845, 4
      %v1848 = vshll.u32 %v1776, 16
      %v1850 = vrot.slane %v1848, 5
      %v1851 = vor.u32 %v1847, %v1850
      %v1852 = vrot.slane %v1851, 4
      %v1854 = vshll.u32 %v1784, 16
      %v1856 = vrot.slane %v1854, 5
      %v1857 = vsel %vm445, %v1852, %v1856
      %v1859 = vshrl.u32 %v1777, 16
      %v1861 = vrot.slane %v1859, 4
      %v1862 = vshll.u32 %v1777, 16
      %v1864 = vrot.slane %v1862, 5
      %v1865 = vor.u32 %v1861, %v1864
      %v1866 = vrot.slane %v1865, 4
      %v1868 = vshll.u32 %v1785, 16
      %v1870 = vrot.slane %v1868, 5
      %v1871 = vsel %vm445, %v1866, %v1870
      %v1873 = vshrl.u32 %v1778, 16
      %v1875 = vrot.slane %v1873, 4
      %v1876 = vshll.u32 %v1778, 16
      %v1878 = vrot.slane %v1876, 5
      %v1879 = vor.u32 %v1875, %v1878
      %v1880 = vrot.slane %v1879, 4
      %v1882 = vshll.u32 %v1786, 16
      %v1884 = vrot.slane %v1882, 5
      %v1885 = vsel %vm445, %v1880, %v1884
      %v1887 = vshrl.u32 %v1779, 16
      %v1889 = vrot.slane %v1887, 4
      %v1890 = vshll.u32 %v1779, 16
      %v1892 = vrot.slane %v1890, 5
      %v1893 = vor.u32 %v1889, %v1892
      %v1894 = vrot.slane %v1893, 4
      %v1896 = vshll.u32 %v1787, 16
      %v1898 = vrot.slane %v1896, 5
      %v1899 = vsel %vm445, %v1894, %v1898
      %v1900 = vld [vmem:[%s1535] sm:$0xe]
      %v1901 = vld [vmem:[%s1535 + $0x8] sm:$0xe]
      %v1902 = vld [vmem:[%s1535 + $0x10] sm:$0xe]
      %v1903 = vld [vmem:[%s1535 + $0x18] sm:$0xe]
      %v1904 = vld [vmem:[%s1535 + $0x20] sm:$0xe]
      %v1905 = vld [vmem:[%s1535 + $0x28] sm:$0xe]
      %v1906 = vld [vmem:[%s1535 + $0x30] sm:$0xe]
      %v1907 = vld [vmem:[%s1535 + $0x38] sm:$0xe]
      %v1924 = vrot.slane %v1900, 5
      %v1925 = vrot.slane %v1924, 4
      %v1926 = vrot.slane %v1780, 5
      %v1927 = vsel %vm584, %v1925, %v1926
      %v1928 = vrot.slane %v1901, 5
      %v1929 = vrot.slane %v1928, 4
      %v1930 = vrot.slane %v1781, 5
      %v1931 = vsel %vm584, %v1929, %v1930
      %v1932 = vrot.slane %v1902, 5
      %v1933 = vrot.slane %v1932, 4
      %v1934 = vrot.slane %v1782, 5
      %v1935 = vsel %vm584, %v1933, %v1934
      %v1936 = vrot.slane %v1903, 5
      %v1937 = vrot.slane %v1936, 4
      %v1938 = vrot.slane %v1783, 5
      %v1939 = vsel %vm584, %v1937, %v1938
      %v1940 = vrot.slane %v1904, 5
      %v1941 = vrot.slane %v1940, 4
      %v1942 = vrot.slane %v1784, 5
      %v1943 = vsel %vm584, %v1941, %v1942
      %v1944 = vrot.slane %v1905, 5
      %v1945 = vrot.slane %v1944, 4
      %v1946 = vrot.slane %v1785, 5
      %v1947 = vsel %vm584, %v1945, %v1946
      %v1948 = vrot.slane %v1906, 5
      %v1949 = vrot.slane %v1948, 4
      %v1950 = vrot.slane %v1786, 5
      %v1951 = vsel %vm584, %v1949, %v1950
      %v1952 = vrot.slane %v1907, 5
      %v1953 = vrot.slane %v1952, 4
      %v1954 = vrot.slane %v1787, 5
      %v1955 = vsel %vm584, %v1953, %v1954
      %s1956 = scalar_lea.vmem [#allocation3], 16
      %v1957 = vld [vmem:[%s1956] sm:$0xf]
      %v1958 = vld [vmem:[%s1956 + $0x8] sm:$0xf]
      %v1959 = vld [vmem:[%s1956 + $0x10] sm:$0xf]
      %v1960 = vld [vmem:[%s1956 + $0x18] sm:$0xf]
      %v1961 = vld [vmem:[%s1956 + $0x20] sm:$0xf]
      %v1962 = vld [vmem:[%s1956 + $0x28] sm:$0xf]
      %v1963 = vld [vmem:[%s1956 + $0x30] sm:$0xf]
      %v1964 = vld [vmem:[%s1956 + $0x38] sm:$0xf]
      %v1965 = vld [vmem:[%s1956 + $0x4] sm:$0x1]
      %v1966 = vld [vmem:[%s1956 + $0xc] sm:$0x1]
      %v1967 = vld [vmem:[%s1956 + $0x14] sm:$0x1]
      %v1968 = vld [vmem:[%s1956 + $0x1c] sm:$0x1]
      %v1969 = vld [vmem:[%s1956 + $0x24] sm:$0x1]
      %v1970 = vld [vmem:[%s1956 + $0x2c] sm:$0x1]
      %v1971 = vld [vmem:[%s1956 + $0x34] sm:$0x1]
      %v1972 = vld [vmem:[%s1956 + $0x3c] sm:$0x1]
      %v1974 = vshrl.u32 %v1957, 16
      %v1976 = vrot.slane %v1974, 4
      %v1977 = vshll.u32 %v1957, 16
      %v1979 = vrot.slane %v1977, 5
      %v1980 = vor.u32 %v1976, %v1979
      %v1981 = vrot.slane %v1980, 4
      %v1983 = vshll.u32 %v1965, 16
      %v1985 = vrot.slane %v1983, 5
      %v1986 = vsel %vm445, %v1981, %v1985
      %v1988 = vshrl.u32 %v1958, 16
      %v1990 = vrot.slane %v1988, 4
      %v1991 = vshll.u32 %v1958, 16
      %v1993 = vrot.slane %v1991, 5
      %v1994 = vor.u32 %v1990, %v1993
      %v1995 = vrot.slane %v1994, 4
      %v1997 = vshll.u32 %v1966, 16
      %v1999 = vrot.slane %v1997, 5
      %v2000 = vsel %vm445, %v1995, %v1999
      %v2002 = vshrl.u32 %v1959, 16
      %v2004 = vrot.slane %v2002, 4
      %v2005 = vshll.u32 %v1959, 16
      %v2007 = vrot.slane %v2005, 5
      %v2008 = vor.u32 %v2004, %v2007
      %v2009 = vrot.slane %v2008, 4
      %v2011 = vshll.u32 %v1967, 16
      %v2013 = vrot.slane %v2011, 5
      %v2014 = vsel %vm445, %v2009, %v2013
      %v2016 = vshrl.u32 %v1960, 16
      %v2018 = vrot.slane %v2016, 4
      %v2019 = vshll.u32 %v1960, 16
      %v2021 = vrot.slane %v2019, 5
      %v2022 = vor.u32 %v2018, %v2021
      %v2023 = vrot.slane %v2022, 4
      %v2025 = vshll.u32 %v1968, 16
      %v2027 = vrot.slane %v2025, 5
      %v2028 = vsel %vm445, %v2023, %v2027
      %v2030 = vshrl.u32 %v1961, 16
      %v2032 = vrot.slane %v2030, 4
      %v2033 = vshll.u32 %v1961, 16
      %v2035 = vrot.slane %v2033, 5
      %v2036 = vor.u32 %v2032, %v2035
      %v2037 = vrot.slane %v2036, 4
      %v2039 = vshll.u32 %v1969, 16
      %v2041 = vrot.slane %v2039, 5
      %v2042 = vsel %vm445, %v2037, %v2041
      %v2044 = vshrl.u32 %v1962, 16
      %v2046 = vrot.slane %v2044, 4
      %v2047 = vshll.u32 %v1962, 16
      %v2049 = vrot.slane %v2047, 5
      %v2050 = vor.u32 %v2046, %v2049
      %v2051 = vrot.slane %v2050, 4
      %v2053 = vshll.u32 %v1970, 16
      %v2055 = vrot.slane %v2053, 5
      %v2056 = vsel %vm445, %v2051, %v2055
      %v2058 = vshrl.u32 %v1963, 16
      %v2060 = vrot.slane %v2058, 4
      %v2061 = vshll.u32 %v1963, 16
      %v2063 = vrot.slane %v2061, 5
      %v2064 = vor.u32 %v2060, %v2063
      %v2065 = vrot.slane %v2064, 4
      %v2067 = vshll.u32 %v1971, 16
      %v2069 = vrot.slane %v2067, 5
      %v2070 = vsel %vm445, %v2065, %v2069
      %v2072 = vshrl.u32 %v1964, 16
      %v2074 = vrot.slane %v2072, 4
      %v2075 = vshll.u32 %v1964, 16
      %v2077 = vrot.slane %v2075, 5
      %v2078 = vor.u32 %v2074, %v2077
      %v2079 = vrot.slane %v2078, 4
      %v2081 = vshll.u32 %v1972, 16
      %v2083 = vrot.slane %v2081, 5
      %v2084 = vsel %vm445, %v2079, %v2083
      %v2085 = vld [vmem:[%s1956] sm:$0xe]
      %v2086 = vld [vmem:[%s1956 + $0x8] sm:$0xe]
      %v2087 = vld [vmem:[%s1956 + $0x10] sm:$0xe]
      %v2088 = vld [vmem:[%s1956 + $0x18] sm:$0xe]
      %v2089 = vld [vmem:[%s1956 + $0x20] sm:$0xe]
      %v2090 = vld [vmem:[%s1956 + $0x28] sm:$0xe]
      %v2091 = vld [vmem:[%s1956 + $0x30] sm:$0xe]
      %v2092 = vld [vmem:[%s1956 + $0x38] sm:$0xe]
      %v2109 = vrot.slane %v2085, 5
      %v2110 = vrot.slane %v2109, 4
      %v2111 = vrot.slane %v1965, 5
      %v2112 = vsel %vm584, %v2110, %v2111
      %v2113 = vrot.slane %v2086, 5
      %v2114 = vrot.slane %v2113, 4
      %v2115 = vrot.slane %v1966, 5
      %v2116 = vsel %vm584, %v2114, %v2115
      %v2117 = vrot.slane %v2087, 5
      %v2118 = vrot.slane %v2117, 4
      %v2119 = vrot.slane %v1967, 5
      %v2120 = vsel %vm584, %v2118, %v2119
      %v2121 = vrot.slane %v2088, 5
      %v2122 = vrot.slane %v2121, 4
      %v2123 = vrot.slane %v1968, 5
      %v2124 = vsel %vm584, %v2122, %v2123
      %v2125 = vrot.slane %v2089, 5
      %v2126 = vrot.slane %v2125, 4
      %v2127 = vrot.slane %v1969, 5
      %v2128 = vsel %vm584, %v2126, %v2127
      %v2129 = vrot.slane %v2090, 5
      %v2130 = vrot.slane %v2129, 4
      %v2131 = vrot.slane %v1970, 5
      %v2132 = vsel %vm584, %v2130, %v2131
      %v2133 = vrot.slane %v2091, 5
      %v2134 = vrot.slane %v2133, 4
      %v2135 = vrot.slane %v1971, 5
      %v2136 = vsel %vm584, %v2134, %v2135
      %v2137 = vrot.slane %v2092, 5
      %v2138 = vrot.slane %v2137, 4
      %v2139 = vrot.slane %v1972, 5
      %v2140 = vsel %vm584, %v2138, %v2139
      %v2149 = vunpack.c.l.b16 %v1588
      %v2150 = vunpack.c.l.b16 %v1589
      %v2151 = vunpack.c.l.b16 %v1590
      %v2152 = vunpack.c.l.b16 %v1591
      %v2153 = vunpack.c.l.b16 %v1592
      %v2154 = vunpack.c.l.b16 %v1593
      %v2155 = vunpack.c.l.b16 %v1594
      %v2156 = vunpack.c.l.b16 %v1595
      %v2157 = vpack.c.b16 %v2150, %v2149
      %v2158 = vpack.c.b16 %v2152, %v2151
      %v2159 = vpack.c.b16 %v2154, %v2153
      %v2160 = vpack.c.b16 %v2156, %v2155
      %v2161 = vunpack.c.l.b16 %v1617
      %v2162 = vunpack.c.l.b16 %v1631
      %v2163 = vunpack.c.l.b16 %v1645
      %v2164 = vunpack.c.l.b16 %v1659
      %v2165 = vunpack.c.l.b16 %v1673
      %v2166 = vunpack.c.l.b16 %v1687
      %v2167 = vunpack.c.l.b16 %v1701
      %v2168 = vunpack.c.l.b16 %v1715
      %v2169 = vpack.c.b16 %v2162, %v2161
      %v2170 = vpack.c.b16 %v2164, %v2163
      %v2171 = vpack.c.b16 %v2166, %v2165
      %v2172 = vpack.c.b16 %v2168, %v2167
      %2173 = vrot.lane.b32.xlu0 %v2169, 8
      %v2174 = vpop.permute.xlu0 %2173
      %2175 = vrot.lane.b32.xlu0 %v2170, 8
      %v2176 = vpop.permute.xlu0 %2175
      %2177 = vrot.lane.b32.xlu0 %v2171, 8
      %v2178 = vpop.permute.xlu0 %2177
      %2179 = vrot.lane.b32.xlu0 %v2172, 8
      %v2180 = vpop.permute.xlu0 %2179
      %v2181 = vunpack.c.l.b16 %v1743
      %v2182 = vunpack.c.l.b16 %v1747
      %v2183 = vunpack.c.l.b16 %v1751
      %v2184 = vunpack.c.l.b16 %v1755
      %v2185 = vunpack.c.l.b16 %v1759
      %v2186 = vunpack.c.l.b16 %v1763
      %v2187 = vunpack.c.l.b16 %v1767
      %v2188 = vunpack.c.l.b16 %v1771
      %v2189 = vpack.c.b16 %v2182, %v2181
      %v2190 = vpack.c.b16 %v2184, %v2183
      %v2191 = vpack.c.b16 %v2186, %v2185
      %v2192 = vpack.c.b16 %v2188, %v2187
      %2193 = vrot.lane.b32.xlu0 %v2189, 16
      %v2194 = vpop.permute.xlu0 %2193
      %2195 = vrot.lane.b32.xlu0 %v2190, 16
      %v2196 = vpop.permute.xlu0 %2195
      %2197 = vrot.lane.b32.xlu0 %v2191, 16
      %v2198 = vpop.permute.xlu0 %2197
      %2199 = vrot.lane.b32.xlu0 %v2192, 16
      %v2200 = vpop.permute.xlu0 %2199
      %v2209 = vunpack.c.l.b16 %v1772
      %v2210 = vunpack.c.l.b16 %v1773
      %v2211 = vunpack.c.l.b16 %v1774
      %v2212 = vunpack.c.l.b16 %v1775
      %v2213 = vunpack.c.l.b16 %v1776
      %v2214 = vunpack.c.l.b16 %v1777
      %v2215 = vunpack.c.l.b16 %v1778
      %v2216 = vunpack.c.l.b16 %v1779
      %v2217 = vpack.c.b16 %v2210, %v2209
      %v2218 = vpack.c.b16 %v2212, %v2211
      %v2219 = vpack.c.b16 %v2214, %v2213
      %v2220 = vpack.c.b16 %v2216, %v2215
      %2221 = vrot.lane.b32.xlu0 %v2217, 24
      %v2222 = vpop.permute.xlu0 %2221
      %2223 = vrot.lane.b32.xlu0 %v2218, 24
      %v2224 = vpop.permute.xlu0 %2223
      %2225 = vrot.lane.b32.xlu0 %v2219, 24
      %v2226 = vpop.permute.xlu0 %2225
      %2227 = vrot.lane.b32.xlu0 %v2220, 24
      %v2228 = vpop.permute.xlu0 %2227
      %v2229 = vunpack.c.l.b16 %v1801
      %v2230 = vunpack.c.l.b16 %v1815
      %v2231 = vunpack.c.l.b16 %v1829
      %v2232 = vunpack.c.l.b16 %v1843
      %v2233 = vunpack.c.l.b16 %v1857
      %v2234 = vunpack.c.l.b16 %v1871
      %v2235 = vunpack.c.l.b16 %v1885
      %v2236 = vunpack.c.l.b16 %v1899
      %v2237 = vpack.c.b16 %v2230, %v2229
      %v2238 = vpack.c.b16 %v2232, %v2231
      %v2239 = vpack.c.b16 %v2234, %v2233
      %v2240 = vpack.c.b16 %v2236, %v2235
      %2241 = vrot.lane.b32.xlu0 %v2237, 32
      %v2242 = vpop.permute.xlu0 %2241
      %2243 = vrot.lane.b32.xlu0 %v2238, 32
      %v2244 = vpop.permute.xlu0 %2243
      %2245 = vrot.lane.b32.xlu0 %v2239, 32
      %v2246 = vpop.permute.xlu0 %2245
      %2247 = vrot.lane.b32.xlu0 %v2240, 32
      %v2248 = vpop.permute.xlu0 %2247
      %v2249 = vunpack.c.l.b16 %v1927
      %v2250 = vunpack.c.l.b16 %v1931
      %v2251 = vunpack.c.l.b16 %v1935
      %v2252 = vunpack.c.l.b16 %v1939
      %v2253 = vunpack.c.l.b16 %v1943
      %v2254 = vunpack.c.l.b16 %v1947
      %v2255 = vunpack.c.l.b16 %v1951
      %v2256 = vunpack.c.l.b16 %v1955
      %v2257 = vpack.c.b16 %v2250, %v2249
      %v2258 = vpack.c.b16 %v2252, %v2251
      %v2259 = vpack.c.b16 %v2254, %v2253
      %v2260 = vpack.c.b16 %v2256, %v2255
      %2261 = vrot.lane.b32.xlu0 %v2257, 40
      %v2262 = vpop.permute.xlu0 %2261
      %2263 = vrot.lane.b32.xlu0 %v2258, 40
      %v2264 = vpop.permute.xlu0 %2263
      %2265 = vrot.lane.b32.xlu0 %v2259, 40
      %v2266 = vpop.permute.xlu0 %2265
      %2267 = vrot.lane.b32.xlu0 %v2260, 40
      %v2268 = vpop.permute.xlu0 %2267
      %v2277 = vunpack.c.l.b16 %v1957
      %v2278 = vunpack.c.l.b16 %v1958
      %v2279 = vunpack.c.l.b16 %v1959
      %v2280 = vunpack.c.l.b16 %v1960
      %v2281 = vunpack.c.l.b16 %v1961
      %v2282 = vunpack.c.l.b16 %v1962
      %v2283 = vunpack.c.l.b16 %v1963
      %v2284 = vunpack.c.l.b16 %v1964
      %v2285 = vpack.c.b16 %v2278, %v2277
      %v2286 = vpack.c.b16 %v2280, %v2279
      %v2287 = vpack.c.b16 %v2282, %v2281
      %v2288 = vpack.c.b16 %v2284, %v2283
      %2289 = vrot.lane.b32.xlu0 %v2285, 48
      %v2290 = vpop.permute.xlu0 %2289
      %2291 = vrot.lane.b32.xlu0 %v2286, 48
      %v2292 = vpop.permute.xlu0 %2291
      %2293 = vrot.lane.b32.xlu0 %v2287, 48
      %v2294 = vpop.permute.xlu0 %2293
      %2295 = vrot.lane.b32.xlu0 %v2288, 48
      %v2296 = vpop.permute.xlu0 %2295
      %v2297 = vunpack.c.l.b16 %v1986
      %v2298 = vunpack.c.l.b16 %v2000
      %v2299 = vunpack.c.l.b16 %v2014
      %v2300 = vunpack.c.l.b16 %v2028
      %v2301 = vunpack.c.l.b16 %v2042
      %v2302 = vunpack.c.l.b16 %v2056
      %v2303 = vunpack.c.l.b16 %v2070
      %v2304 = vunpack.c.l.b16 %v2084
      %v2305 = vpack.c.b16 %v2298, %v2297
      %v2306 = vpack.c.b16 %v2300, %v2299
      %v2307 = vpack.c.b16 %v2302, %v2301
      %v2308 = vpack.c.b16 %v2304, %v2303
      %2309 = vrot.lane.b32.xlu0 %v2305, 56
      %v2310 = vpop.permute.xlu0 %2309
      %2311 = vrot.lane.b32.xlu0 %v2306, 56
      %v2312 = vpop.permute.xlu0 %2311
      %2313 = vrot.lane.b32.xlu0 %v2307, 56
      %v2314 = vpop.permute.xlu0 %2313
      %2315 = vrot.lane.b32.xlu0 %v2308, 56
      %v2316 = vpop.permute.xlu0 %2315
      %v2317 = vunpack.c.l.b16 %v2112
      %v2318 = vunpack.c.l.b16 %v2116
      %v2319 = vunpack.c.l.b16 %v2120
      %v2320 = vunpack.c.l.b16 %v2124
      %v2321 = vunpack.c.l.b16 %v2128
      %v2322 = vunpack.c.l.b16 %v2132
      %v2323 = vunpack.c.l.b16 %v2136
      %v2324 = vunpack.c.l.b16 %v2140
      %v2325 = vpack.c.b16 %v2318, %v2317
      %v2326 = vpack.c.b16 %v2320, %v2319
      %v2327 = vpack.c.b16 %v2322, %v2321
      %v2328 = vpack.c.b16 %v2324, %v2323
      %2329 = vrot.lane.b32.xlu0 %v2325, 64
      %v2330 = vpop.permute.xlu0 %2329
      %2331 = vrot.lane.b32.xlu0 %v2326, 64
      %v2332 = vpop.permute.xlu0 %2331
      %2333 = vrot.lane.b32.xlu0 %v2327, 64
      %v2334 = vpop.permute.xlu0 %2333
      %2335 = vrot.lane.b32.xlu0 %v2328, 64
      %v2336 = vpop.permute.xlu0 %2335
      %vm2337 = vcmask 64512
      %v2340 = vsel %vm2337, %v2157, %v2174
      %v2343 = vsel %vm2337, %v2158, %v2176
      %v2346 = vsel %vm2337, %v2159, %v2178
      %v2349 = vsel %vm2337, %v2160, %v2180
      %v2351 = vsel %vm1174, %v2340, %v2194
      %v2353 = vsel %vm1174, %v2343, %v2196
      %v2355 = vsel %vm1174, %v2346, %v2198
      %v2357 = vsel %vm1174, %v2349, %v2200
      %vm2358 = vcmask 195584
      %v2360 = vsel %vm2358, %v2351, %v2222
      %v2362 = vsel %vm2358, %v2353, %v2224
      %v2364 = vsel %vm2358, %v2355, %v2226
      %v2366 = vsel %vm2358, %v2357, %v2228
      %v2368 = vsel %vm1187, %v2360, %v2242
      %v2370 = vsel %vm1187, %v2362, %v2244
      %v2372 = vsel %vm1187, %v2364, %v2246
      %v2374 = vsel %vm1187, %v2366, %v2248
      %vm2375 = vcmask 326656
      %v2377 = vsel %vm2375, %v2368, %v2262
      %v2379 = vsel %vm2375, %v2370, %v2264
      %v2381 = vsel %vm2375, %v2372, %v2266
      %v2383 = vsel %vm2375, %v2374, %v2268
      %v2385 = vsel %vm1196, %v2377, %v2290
      %v2387 = vsel %vm1196, %v2379, %v2292
      %v2389 = vsel %vm1196, %v2381, %v2294
      %v2391 = vsel %vm1196, %v2383, %v2296
      %vm2392 = vcmask 457728
      %v2394 = vsel %vm2392, %v2385, %v2310
      %v2396 = vsel %vm2392, %v2387, %v2312
      %v2398 = vsel %vm2392, %v2389, %v2314
      %v2400 = vsel %vm2392, %v2391, %v2316
      %v2402 = vsel %vm1205, %v2394, %v2330
      %v2404 = vsel %vm1205, %v2396, %v2332
      %v2406 = vsel %vm1205, %v2398, %v2334
      %v2408 = vsel %vm1205, %v2400, %v2336
      %v2409 = vld [vmem:[%s3] sm:$0xf]
      %v2410 = vld [vmem:[%s3 + $0x4] sm:$0xf]
      %v2411 = vld [vmem:[%s3 + $0x8] sm:$0xf]
      %v2412 = vld [vmem:[%s3 + $0xc] sm:$0xf]
      %v2413 = vld [vmem:[%s3 + $0x10] sm:$0xf]
      %v2414 = vld [vmem:[%s3 + $0x14] sm:$0xf]
      %v2415 = vld [vmem:[%s3 + $0x18] sm:$0xf]
      %v2416 = vld [vmem:[%s3 + $0x1c] sm:$0xf]
      %v2417 = vld [vmem:[%s3 + $0x20] sm:$0xf]
      %v2418 = vld [vmem:[%s4] sm:$0x1]
      %v2420 = vlaneseq
      %v2421 = vshrl.u32 %v2420, 7
      %v2422 = vsub.s32 0, %v2421
      %v2423 = vrot.slane %v2418, %v2422
      %v2434 = vunpack.c.l.b16 %v2409
      %v2435 = vunpack.c.l.b16 %v2410
      %v2436 = vunpack.c.l.b16 %v2411
      %v2437 = vunpack.c.l.b16 %v2412
      %v2438 = vunpack.c.l.b16 %v2413
      %v2439 = vunpack.c.l.b16 %v2414
      %v2440 = vunpack.c.l.b16 %v2415
      %v2441 = vunpack.c.l.b16 %v2416
      %v2442 = vunpack.c.l.b16 %v2417
      %v2443 = vpack.c.b16 %v2435, %v2434
      %v2444 = vpack.c.b16 %v2437, %v2436
      %v2445 = vpack.c.b16 %v2439, %v2438
      %v2446 = vpack.c.b16 %v2441, %v2440
      %v2447 = vpack.c.b16 %v2442, %v2442
      %vm2452 = vcmask 588800
      %v2453 = vsel %vm2452, %v2402, 0
      %v2455 = vsel %vm2452, %v2404, 0
      %v2457 = vsel %vm2452, %v2406, 0
      %v2459 = vsel %vm2452, %v2408, 0
      %vm2461 = vcmask 1043456
      %v2463 = vsel %vm2461, %v2447, 0
      %2465 = vmatprep.subr.bf16.mxu0 0
      %2466 = vmatpush1.bf16.msra.mxu0 %v2443
      %2467 = vmatprep.subr.bf16.mxu0 0
      %2468 = vmatpush1.bf16.msra.mxu0 %v2444
      %2469 = vmatprep.subr.bf16.mxu0 0
      %2470 = vmatpush1.bf16.msra.mxu0 %v2445
      %2471 = vmatprep.subr.bf16.mxu0 0
      %2472 = vmatpush1.bf16.msra.mxu0 %v2446
      %2473 = vmatprep.subr.bf16.mxu0 0
      %2474 = vmatpush1.bf16.msra.mxu0 %v2463
      %2475 = vmatprep.subr.bf16.mxu0 0
      %2476 = vmatpush1.bf16.msra.mxu0 0
      %2477 = vmatprep.subr.bf16.mxu0 0
      %2478 = vmatpush1.bf16.msra.mxu0 0
      %2479 = vmatprep.subr.bf16.mxu0 0
      %2480 = vmatpush1.bf16.msra.mxu0 0
      %2481 = vmatprep.subr.bf16.mxu0 0
      %2482 = vmatpush1.bf16.msra.mxu0 0
      %2483 = vmatprep.subr.bf16.mxu0 0
      %2484 = vmatpush1.bf16.msra.mxu0 0
      %2485 = vmatprep.subr.bf16.mxu0 0
      %2486 = vmatpush1.bf16.msra.mxu0 0
      %2487 = vmatprep.subr.bf16.mxu0 0
      %2488 = vmatpush1.bf16.msra.mxu0 0
      %2489 = vmatprep.subr.bf16.mxu0 0
      %2490 = vmatpush1.bf16.msra.mxu0 0
      %2491 = vmatprep.subr.bf16.mxu0 0
      %2492 = vmatpush1.bf16.msra.mxu0 0
      %2493 = vmatprep.subr.bf16.mxu0 0
      %2494 = vmatpush1.bf16.msra.mxu0 0
      %2495 = vmatprep.subr.bf16.mxu0 0
      %2496 = vmatpush1.bf16.msra.mxu0 0
      %2497 = vmatprep.mubr.bf16.mxu0 0
      %2498 = vmatmul.mubr.bf16.gmra.mrb[0].mxu0 %v2453
      %v2499 = vpop.f32.mrb[0].mxu0
      %v2500 = vadd.f32 %v2423, %v2499
      %v2501 = vpop.f32.mrb[0].mxu0
      %v2502 = vpop.f32.mrb[0].mxu0
      %v2503 = vadd.f32 %v2423, %v2502
      %v2504 = vpop.f32.mrb[0].mxu0
      %2505 = vmatprep.mubr.bf16.mxu0 0
      %2506 = vmatmul.mubr.bf16.gmra.mrb[0].mxu0 %v2455
      %v2507 = vpop.f32.mrb[0].mxu0
      %v2508 = vadd.f32 %v2423, %v2507
      %v2509 = vpop.f32.mrb[0].mxu0
      %v2510 = vpop.f32.mrb[0].mxu0
      %v2511 = vadd.f32 %v2423, %v2510
      %v2512 = vpop.f32.mrb[0].mxu0
      %2513 = vmatprep.mubr.bf16.mxu0 0
      %2514 = vmatmul.mubr.bf16.gmra.mrb[0].mxu0 %v2457
      %v2515 = vpop.f32.mrb[0].mxu0
      %v2516 = vadd.f32 %v2423, %v2515
      %v2517 = vpop.f32.mrb[0].mxu0
      %v2518 = vpop.f32.mrb[0].mxu0
      %v2519 = vadd.f32 %v2423, %v2518
      %v2520 = vpop.f32.mrb[0].mxu0
      %2521 = vmatprep.mubr.bf16.mxu0 0
      %2522 = vmatmul.mubr.bf16.gmra.mrb[0].mxu0 %v2459
      %v2523 = vpop.f32.mrb[0].mxu0
      %v2524 = vadd.f32 %v2423, %v2523
      %v2525 = vpop.f32.mrb[0].mxu0
      %v2526 = vpop.f32.mrb[0].mxu0
      %v2527 = vadd.f32 %v2423, %v2526
      %v2528 = vpop.f32.mrb[0].mxu0
      %2529 = vdwg.mxu0
      %v2530 = vpack.c.bf16 %v2503, %v2500
      %v2531 = vpack.c.bf16 %v2511, %v2508
      %v2532 = vpack.c.bf16 %v2519, %v2516
      %v2533 = vpack.c.bf16 %v2527, %v2524
      %v2538 = vunpack.c.l.b16 %v2530
      %v2539 = vunpack.c.h.b16 %v2530
      %v2540 = vunpack.c.l.b16 %v2531
      %v2541 = vunpack.c.h.b16 %v2531
      %v2542 = vunpack.c.l.b16 %v2532
      %v2543 = vunpack.c.h.b16 %v2532
      %v2544 = vunpack.c.l.b16 %v2533
      %v2545 = vunpack.c.h.b16 %v2533
      %v2546 = vpack.c.b16 %v2538, %v2538
      %v2547 = vpack.c.b16 %v2539, %v2539
      %v2548 = vpack.c.b16 %v2540, %v2540
      %v2549 = vpack.c.b16 %v2541, %v2541
      %v2550 = vpack.c.b16 %v2542, %v2542
      %v2551 = vpack.c.b16 %v2543, %v2543
      %v2552 = vpack.c.b16 %v2544, %v2544
      %v2553 = vpack.c.b16 %v2545, %v2545
      %2562 = vst.msk [vmem:[%s257] sm:$0xf] %vm262, %v2546
      %2563 = vst.msk [vmem:[%s257 + $0x4] sm:$0xf] %vm262, %v2547
      %2564 = vst.msk [vmem:[%s257 + $0x8] sm:$0xf] %vm262, %v2548
      %2565 = vst.msk [vmem:[%s257 + $0xc] sm:$0xf] %vm262, %v2549
      %2566 = vst.msk [vmem:[%s257 + $0x10] sm:$0xf] %vm262, %v2550
      %2567 = vst.msk [vmem:[%s257 + $0x14] sm:$0xf] %vm262, %v2551
      %2568 = vst.msk [vmem:[%s257 + $0x18] sm:$0xf] %vm262, %v2552
      %2569 = vst.msk [vmem:[%s257 + $0x1c] sm:$0xf] %vm262, %v2553
      %v2570 = vsel %vm1174, %v2500, 0.0
      %v2571 = vsel %vm1174, %v2503, 0.0
      %v2572 = vadd.f32 %v2570, %v2571
      %v2573 = vsel %vm1174, %v2508, 0.0
      %v2574 = vadd.f32 %v2572, %v2573
      %v2575 = vsel %vm1174, %v2511, 0.0
      %v2576 = vadd.f32 %v2574, %v2575
      %v2577 = vsel %vm1174, %v2516, 0.0
      %v2578 = vadd.f32 %v2576, %v2577
      %v2579 = vsel %vm1174, %v2519, 0.0
      %v2580 = vadd.f32 %v2578, %v2579
      %v2581 = vsel %vm1174, %v2524, 0.0
      %v2582 = vadd.f32 %v2580, %v2581
      %v2583 = vsel %vm1174, %v2527, 0.0
      %v2584 = vadd.f32 %v2582, %v2583
      %v2585 = vrot.slane %v2584, 4
      %v2586 = vadd.f32 %v2584, %v2585
      %v2587 = vrot.slane %v2586, 2
      %v2588 = vadd.f32 %v2586, %v2587
      %v2589 = vrot.slane %v2588, 1
      %v2590 = vadd.f32 %v2588, %v2589
      %v2591 = vmul.f32 %v2500, %v2500
      %v2592 = vmul.f32 %v2503, %v2503
      %v2593 = vmul.f32 %v2508, %v2508
      %v2594 = vmul.f32 %v2511, %v2511
      %v2595 = vmul.f32 %v2516, %v2516
      %v2596 = vmul.f32 %v2519, %v2519
      %v2597 = vmul.f32 %v2524, %v2524
      %v2598 = vmul.f32 %v2527, %v2527
      %v2599 = vsel %vm1174, %v2591, 0.0
      %v2600 = vsel %vm1174, %v2592, 0.0
      %v2601 = vadd.f32 %v2599, %v2600
      %v2602 = vsel %vm1174, %v2593, 0.0
      %v2603 = vadd.f32 %v2601, %v2602
      %v2604 = vsel %vm1174, %v2594, 0.0
      %v2605 = vadd.f32 %v2603, %v2604
      %v2606 = vsel %vm1174, %v2595, 0.0
      %v2607 = vadd.f32 %v2605, %v2606
      %v2608 = vsel %vm1174, %v2596, 0.0
      %v2609 = vadd.f32 %v2607, %v2608
      %v2610 = vsel %vm1174, %v2597, 0.0
      %v2611 = vadd.f32 %v2609, %v2610
      %v2612 = vsel %vm1174, %v2598, 0.0
      %v2613 = vadd.f32 %v2611, %v2612
      %v2614 = vrot.slane %v2613, 4
      %v2615 = vadd.f32 %v2613, %v2614
      %v2616 = vrot.slane %v2615, 2
      %v2617 = vadd.f32 %v2615, %v2616
      %v2618 = vrot.slane %v2617, 1
      %v2619 = vadd.f32 %v2617, %v2618
      %2621 = vrot.lane.b32.xlu0 %v2619, 16
      %v2622 = vpop.permute.xlu0 %2621
      %v2624 = vsel %vm1174, %v2590, %v2622
      %vm2625 = vcmask 253952
      %2626 = vst.msk [vmem:[%s260] sm:$0x1] %vm2625, %v2624
      %p2627 = scmp.lt.s32.totalorder %s18, 1
      %s2628 = scalar_select %p2627, %s18, 1
      %s2629 = smul.addr %s2628, 8
      %s2630 = smul.addr %s2629, 4
      %s2631 = scalar_lea.vmem %s5, %s2630
      %p2632 = scmp.lt.s32.totalorder %s18, 1
      %s2633 = scalar_select %p2632, %s18, 1
      %s2634 = scalar_lea.vmem %s6, %s2633
      // Predicated region
      $region41: #{unet_block_innermost_pallas.1} parent=39 // pred_check
        %p2635 = pneg %p146
      $region42: #{unet_block_innermost_pallas.1} parent=39 // pred_check_branch
        %2637 = sbr.rel (%p2635) target = $region44
      $region43: #{unet_block_innermost_pallas.1} parent=39 // pred_region
        _
      $region44: #{unet_block_innermost_pallas.1} parent=39 // pred_fallthru
        _
      // Predicated region
      $region45: #{unet_block_innermost_pallas.1} parent=39 // pred_check
        %p2638 = pneg %p172
      $region46: #{unet_block_innermost_pallas.1} parent=39 // pred_check_branch
        %2640 = sbr.rel (%p2638) target = $region48
      $region47: #{unet_block_innermost_pallas.1} parent=39 // pred_region
        _
      $region48: #{unet_block_innermost_pallas.1} parent=39 // pred_fallthru
        _
    $region40: #{unet_block_innermost_pallas.1} parent=5 // pred_fallthru
      _
    %p2641 = scmp.le.s32.totalorder 2, %s13
    // Predicated region
    $region49: #{unet_block_innermost_pallas.1} parent=5 // pred_check
      %p2642 = pneg %p2641
    $region50: #{unet_block_innermost_pallas.1} parent=5 // pred_check_branch
      %2644 = sbr.rel (%p2642) target = $region52
    $region51: #{unet_block_innermost_pallas.1} parent=5 // pred_region
      %s2645 = ssub.s32 %s13, 2
      // Predicated region
      $region53: #{unet_block_innermost_pallas.1} parent=51 // pred_check
        %p2646 = pneg %p152
      $region54: #{unet_block_innermost_pallas.1} parent=51 // pred_check_branch
        %2648 = sbr.rel (%p2646) target = $region56
      $region55: #{unet_block_innermost_pallas.1} parent=51 // pred_region
        %p2649 = scmp.lt.s32.totalorder %s19, 1
        %s2650 = scalar_select %p2649, %s19, 1
        %s2651 = smul.addr %s2650, 8
        %s2652 = smul.addr %s2651, 4
        %s2653 = scalar_lea.vmem %s5, %s2652
      $region56: #{unet_block_innermost_pallas.1} parent=51 // pred_fallthru
        _
      // Predicated region
      $region57: #{unet_block_innermost_pallas.1} parent=51 // pred_check
        %p2654 = pneg %p178
      $region58: #{unet_block_innermost_pallas.1} parent=51 // pred_check_branch
        %2656 = sbr.rel (%p2654) target = $region60
      $region59: #{unet_block_innermost_pallas.1} parent=51 // pred_region
        %p2657 = scmp.lt.s32.totalorder %s19, 1
        %s2658 = scalar_select %p2657, %s19, 1
        %s2659 = scalar_lea.vmem %s6, %s2658
      $region60: #{unet_block_innermost_pallas.1} parent=51 // pred_fallthru
        _
    $region52: #{unet_block_innermost_pallas.1} parent=5 // pred_fallthru
      _
  $region6: #{unet_block_innermost_pallas.1} parent=0 // loop_footer
    %s17 = sadd.s32 1, %s13
  $region7: #{unet_block_innermost_pallas.1} parent=0 // loop_footer_branch
    %12 = sbr.rel target = $region3
  $region8: #{unet_block_innermost_pallas.1} parent=0 // loop_exit
    _

</llo_original>
